<compile_context>
chip_gen: v5e
topology: v5e:2x2
jax: 0.10.0
libtpu: 0.0.40
codegen_flags: <defaults>
</compile_context>

<pallas_src>
import functools
import math

import jax
import jax.numpy as jnp
from jax import lax
from jax.experimental import pallas as pl
from jax.experimental.pallas import tpu as pltpu

EPS = 1e-6
NEG_INF = -1e9

# Set to jnp.bfloat16 on v6e/v7x for ~2x MXU throughput and half the weight
# traffic (accumulation stays f32 via preferred_element_type).  Kept f32 here
# so the demo matches the f32 reference at 1e-4.
MM_DTYPE = jnp.float32


def _cast(x):
    return x if MM_DTYPE == jnp.float32 else x.astype(MM_DTYPE)


def _const_spec(shape, index_map):
    # Constant-index blocks (weights / biases / LN params) never change across
    # the grid -> single-buffer them so the pipeline doesn't keep a useless
    # second copy of every weight resident in VMEM.
    if hasattr(pl, "Buffered"):
        try:
            return pl.BlockSpec(shape, index_map, pipeline_mode=pl.Buffered(1))
        except TypeError:  # older jax without pipeline_mode on BlockSpec
            pass
    return pl.BlockSpec(shape, index_map)


def _vmem_limit(resident_bytes, working_bytes):
    # generous: double-buffer everything + working set + headroom, clamped to
    # what every chip generation can actually provide.
    est = 2 * resident_bytes + working_bytes + (8 << 20)
    return int(min(64 << 20, max(est, 32 << 20)))


# ----------------------------- kernel helpers -------------------------------

def _ln(x, g, b):
    # Annotated-Transformer LayerNorm: unbiased std (Bessel), eps added to the
    # std.  Reciprocal-multiply (one recip per row) instead of a full-tile
    # divide keeps the VALU slot free.
    d = x.shape[-1]
    mean = jnp.mean(x, axis=-1, keepdims=True)
    diff = x - mean
    var = jnp.sum(diff * diff, axis=-1, keepdims=True) * (1.0 / (d - 1))
    inv = pl.reciprocal(jnp.sqrt(var) + EPS)
    return g * (diff * inv) + b


def _causal_neg_mask(tq, tk):
    row = lax.broadcasted_iota(jnp.int32, (tq, tk), 0)
    col = lax.broadcasted_iota(jnp.int32, (tq, tk), 1)
    return col > row          # True = masked out


def _attend(q, k, v, wo, bo, neg_mask, nheads, dk, scale):
    # q: [Tq, D], k/v: [Tk, D], wo: [D, D], bo: [1, D].
    # Per-head scores / softmax / PV (unrolled; the K=dk contraction there is
    # inherent to attention), then ONE [Tq,D]x[D,D] output projection on the
    # lane-concatenated context — full-depth MXU contraction, and numerically
    # identical to the reference's concat-then-project.
    ctx = []
    for hd in range(nheads):
        sl = slice(hd * dk, (hd + 1) * dk)
        qh, kh, vh = q[:, sl], k[:, sl], v[:, sl]
        # contract last dims directly — no explicit K transpose
        s = lax.dot_general(_cast(qh), _cast(kh), (((1,), (1,)), ((), ())),
                            preferred_element_type=jnp.float32) * scale
        if neg_mask is not None:
            s = jnp.where(neg_mask, NEG_INF, s)
        s_max = jnp.max(s, axis=-1, keepdims=True)
        p = jnp.exp(s - s_max)
        p = p * pl.reciprocal(jnp.sum(p, axis=-1, keepdims=True))
        ctx.append(lax.dot_general(_cast(p), _cast(vh),
                                   (((1,), (0,)), ((), ())),
                                   preferred_element_type=jnp.float32))
    ctx = jnp.concatenate(ctx, axis=-1)                         # [Tq, D]
    return jnp.dot(_cast(ctx), _cast(wo),
                   preferred_element_type=jnp.float32) + bo


# ------------------------------- kernels -------------------------------------

def _self_attn_kernel(x_ref, *refs, nheads, dk, scale, causal, has_mask):
    if has_mask:
        mask_ref, refs = refs[0], refs[1:]
    g_ref, b_ref, wqkv_ref, bqkv_ref, wo_ref, bo_ref, o_ref = refs
    x = x_ref[...]                                              # [T, D]
    t, d = x.shape
    xn = _ln(x, g_ref[...], b_ref[...])
    qkv = jnp.dot(_cast(xn), _cast(wqkv_ref[...]),
                  preferred_element_type=jnp.float32) + bqkv_ref[...]
    q, k, v = qkv[:, :d], qkv[:, d:2 * d], qkv[:, 2 * d:]
    if causal:
        neg_mask = _causal_neg_mask(t, t)     # generated in-kernel, no DMA
    elif has_mask:
        neg_mask = mask_ref[...] == 0
    else:
        neg_mask = None
    out = _attend(q, k, v, wo_ref[...], bo_ref[...], neg_mask,
                  nheads, dk, scale)
    o_ref[...] = (x + out).astype(o_ref.dtype)


def _src_attn_kernel(x_ref, mem_ref, *refs, nheads, dk, scale, has_mask):
    if has_mask:
        mask_ref, refs = refs[0], refs[1:]
    (g_ref, b_ref, wq_ref, bq_ref, wkv_ref, bkv_ref,
     wo_ref, bo_ref, o_ref) = refs
    x = x_ref[...]                                              # [Tq, D]
    d = x.shape[-1]
    xn = _ln(x, g_ref[...], b_ref[...])
    q = jnp.dot(_cast(xn), _cast(wq_ref[...]),
                preferred_element_type=jnp.float32) + bq_ref[...]
    # keys/values come from raw memory (no LayerNorm), per the reference lambda
    kv = jnp.dot(_cast(mem_ref[...]), _cast(wkv_ref[...]),
                 preferred_element_type=jnp.float32) + bkv_ref[...]
    k, v = kv[:, :d], kv[:, d:]
    neg_mask = (mask_ref[...] == 0) if has_mask else None
    out = _attend(q, k, v, wo_ref[...], bo_ref[...], neg_mask,
                  nheads, dk, scale)
    o_ref[...] = (x + out).astype(o_ref.dtype)


def _ffn_kernel(x_ref, g_ref, b_ref, w1_ref, b1_ref, w2_ref, b2_ref, o_ref,
                xn_ref, acc_ref):
    # grid = (row tiles, Dff chunks); Dff axis is a streamed reduction.
    kk = pl.program_id(1)

    @pl.when(kk == 0)
    def _():
        xn_ref[...] = _ln(x_ref[...], g_ref[...], b_ref[...])
        acc_ref[...] = jnp.zeros_like(acc_ref)

    h = jnp.dot(_cast(xn_ref[...]), _cast(w1_ref[...]),
                preferred_element_type=jnp.float32) + b1_ref[...]
    h = jnp.maximum(h, 0.0)                                     # ReLU
    acc_ref[...] += jnp.dot(_cast(h), _cast(w2_ref[...]),
                            preferred_element_type=jnp.float32)

    @pl.when(kk == pl.num_programs(1) - 1)
    def _():
        o_ref[...] = (x_ref[...] + acc_ref[...]
                      + b2_ref[...]).astype(o_ref.dtype)


# ------------------------------- wrappers -------------------------------------

def self_attn_sublayer(x, mask, p, ln_g, ln_b, nheads, *, causal=False):
    B, T, D = x.shape
    dk = D // nheads
    has_mask = (mask is not None) and (not causal)
    kern = functools.partial(_self_attn_kernel, nheads=nheads, dk=dk,
                             scale=1.0 / math.sqrt(dk), causal=causal,
                             has_mask=has_mask)
    c = lambda b: (0, 0)
    in_specs = [pl.BlockSpec((None, T, D), lambda b: (b, 0, 0))]
    args = [x]
    if has_mask:
        in_specs.append(pl.BlockSpec((None, T, T), lambda b: (b, 0, 0)))
        args.append(mask)
    in_specs += [_const_spec((1, D), c), _const_spec((1, D), c),
                 _const_spec((D, 3 * D), c), _const_spec((1, 3 * D), c),
                 _const_spec((D, D), c), _const_spec((1, D), c)]
    args += [ln_g.reshape(1, D), ln_b.reshape(1, D), p["wqkv"], p["bqkv"],
             p["wo"], p["bo"].reshape(1, D)]
    fp = 4
    resident = fp * (2 * T * D + 4 * D * D + 7 * D
                     + (T * T if has_mask else 0))
    working = fp * (4 * T * D + (nheads + 2) * T * T)
    return pl.pallas_call(
        kern,
        out_shape=jax.ShapeDtypeStruct((B, T, D), x.dtype),
        grid=(B,),
        in_specs=in_specs,
        out_specs=pl.BlockSpec((None, T, D), lambda b: (b, 0, 0)),
        compiler_params=pltpu.CompilerParams(
            dimension_semantics=("parallel",),
            vmem_limit_bytes=_vmem_limit(resident, working)),
    )(*args)


def src_attn_sublayer(x, memory, mask, p, ln_g, ln_b, nheads, *,
                      all_visible=False):
    B, Tq, D = x.shape
    Tk = memory.shape[1]
    dk = D // nheads
    has_mask = (mask is not None) and (not all_visible)
    kern = functools.partial(_src_attn_kernel, nheads=nheads, dk=dk,
                             scale=1.0 / math.sqrt(dk), has_mask=has_mask)
    c = lambda b: (0, 0)
    in_specs = [pl.BlockSpec((None, Tq, D), lambda b: (b, 0, 0)),
                pl.BlockSpec((None, Tk, D), lambda b: (b, 0, 0))]
    args = [x, memory]
    if has_mask:
        in_specs.append(pl.BlockSpec((None, Tq, Tk), lambda b: (b, 0, 0)))
        args.append(mask)
    in_specs += [_const_spec((1, D), c), _const_spec((1, D), c),
                 _const_spec((D, D), c), _const_spec((1, D), c),
                 _const_spec((D, 2 * D), c), _const_spec((1, 2 * D), c),
                 _const_spec((D, D), c), _const_spec((1, D), c)]
    args += [ln_g.reshape(1, D), ln_b.reshape(1, D),
             p["wq"], p["bq"].reshape(1, D), p["wkv"], p["bkv"],
             p["wo"], p["bo"].reshape(1, D)]
    fp = 4
    resident = fp * (2 * Tq * D + Tk * D + 4 * D * D + 8 * D
                     + (Tq * Tk if has_mask else 0))
    working = fp * (2 * Tq * D + 3 * Tk * D + (nheads + 2) * Tq * Tk)
    return pl.pallas_call(
        kern,
        out_shape=jax.ShapeDtypeStruct((B, Tq, D), x.dtype),
        grid=(B,),
        in_specs=in_specs,
        out_specs=pl.BlockSpec((None, Tq, D), lambda b: (b, 0, 0)),
        compiler_params=pltpu.CompilerParams(
            dimension_semantics=("parallel",),
            vmem_limit_bytes=_vmem_limit(resident, working)),
    )(*args)


def _row_tile(n, cap=256):
    # cap 256 keeps the MXU M-dim healthy while leaving VMEM headroom for the
    # streamed FFN weights (v7x's 64 MiB is the binding case).
    for t in (256, 128, 64, 32, 16, 8):
        if t <= cap and n % t == 0:
            return t
    return n


def _ff_tile(dff, cap=512):
    if dff <= cap:
        return dff
    for t in (512, 256, 128):
        if dff % t == 0:
            return t
    return dff


def ffn_sublayer(x, ln_g, ln_b, w1, b1, w2, b2):
    B, T, D = x.shape
    Dff = w1.shape[1]
    n = B * T
    tm = _row_tile(n)
    tk = _ff_tile(Dff)
    x2d = x.reshape(n, D)
    c = lambda i, k: (0, 0)
    fp = 4
    resident = fp * (2 * tm * D + 2 * D * tk + tk + 3 * D)
    working = fp * (2 * tm * D + tm * tk)        # xn/acc scratch + hidden tile
    out = pl.pallas_call(
        _ffn_kernel,
        out_shape=jax.ShapeDtypeStruct((n, D), x.dtype),
        grid=(n // tm, Dff // tk),
        in_specs=[pl.BlockSpec((tm, D), lambda i, k: (i, 0)),       # x rows
                  _const_spec((1, D), c),                           # ln gamma
                  _const_spec((1, D), c),                           # ln beta
                  pl.BlockSpec((D, tk), lambda i, k: (0, k)),       # w1 chunk
                  pl.BlockSpec((1, tk), lambda i, k: (0, k)),       # b1 chunk
                  pl.BlockSpec((tk, D), lambda i, k: (k, 0)),       # w2 chunk
                  _const_spec((1, D), c)],                          # b2
        out_specs=pl.BlockSpec((tm, D), lambda i, k: (i, 0)),
        scratch_shapes=[pltpu.VMEM((tm, D), jnp.float32),           # LN(x) rows
                        pltpu.VMEM((tm, D), jnp.float32)],          # f32 acc
        compiler_params=pltpu.CompilerParams(
            dimension_semantics=("parallel", "arbitrary"),
            vmem_limit_bytes=_vmem_limit(resident, working)),
    )(x2d, ln_g.reshape(1, D), ln_b.reshape(1, D), w1, b1.reshape(1, Dff),
      w2, b2.reshape(1, D))
    return out.reshape(B, T, D)


def prepare_params(params):
    """Pre-fuse QKV / KV projection weights once (outside the forward), so no
    HBM-level concatenation runs per call."""
    p = dict(params)
    sa = dict(params["self_attn"])
    sa["wqkv"] = jnp.concatenate([sa["wq"], sa["wk"], sa["wv"]], axis=1)
    sa["bqkv"] = jnp.concatenate([sa["bq"], sa["bk"], sa["bv"]]).reshape(1, -1)
    p["self_attn"] = sa
    ca = dict(params["src_attn"])
    ca["wkv"] = jnp.concatenate([ca["wk"], ca["wv"]], axis=1)
    ca["bkv"] = jnp.concatenate([ca["bk"], ca["bv"]]).reshape(1, -1)
    p["src_attn"] = ca
    return p


def decoder_layer(params, x, memory, src_mask, tgt_mask, h, *,
                  tgt_is_causal=False, src_all_visible=False):
    # TODO(synk): dropout inside SublayerConnection/attention is treated as
    # identity (inference / p=0); no RNG-based dropout is emitted.
    # TODO(synk): at very large T (>=1-2k) the attention sublayers should add
    # flash-style Tq ("parallel") / Tk ("arbitrary") grid axes with running
    # max/denominator VMEM scratch so blocks fit v7x's 64 MiB VMEM.
    x = self_attn_sublayer(x, tgt_mask, params["self_attn"],
                           params["ln0_g"], params["ln0_b"], h,
                           causal=tgt_is_causal)
    x = src_attn_sublayer(x, memory, src_mask, params["src_attn"],
                          params["ln1_g"], params["ln1_b"], h,
                          all_visible=src_all_visible)
    x = ffn_sublayer(x, params["ln2_g"], params["ln2_b"], params["ff_w1"],
                     params["ff_b1"], params["ff_w2"], params["ff_b2"])
    return x


# --------------------------- pure-JAX reference -----------------------------

def _ref_ln(x, g, b):
    mean = jnp.mean(x, -1, keepdims=True)
    diff = x - mean
    std = jnp.sqrt(jnp.sum(diff * diff, -1, keepdims=True) / (x.shape[-1] - 1))
    return g * diff / (std + EPS) + b


def _ref_mha(p, xq, xkv, mask, h):
    B, Tq, D = xq.shape
    Tk = xkv.shape[1]
    dk = D // h
    q = (xq.reshape(-1, D) @ p["wq"] + p["bq"]).reshape(B, Tq, h, dk).transpose(0, 2, 1, 3)
    k = (xkv.reshape(-1, D) @ p["wk"] + p["bk"]).reshape(B, Tk, h, dk).transpose(0, 2, 1, 3)
    v = (xkv.reshape(-1, D) @ p["wv"] + p["bv"]).reshape(B, Tk, h, dk).transpose(0, 2, 1, 3)
    s = jnp.einsum("bhqd,bhkd->bhqk", q, k) / math.sqrt(dk)
    s = jnp.where(mask[:, None, :, :] == 0, NEG_INF, s)
    p_attn = jax.nn.softmax(s, axis=-1)
    o = jnp.einsum("bhqk,bhkd->bhqd", p_attn, v).transpose(0, 2, 1, 3).reshape(-1, D)
    return (o @ p["wo"] + p["bo"]).reshape(B, Tq, D)


def _ref_decoder(params, x, memory, src_mask, tgt_mask, h):
    xn = _ref_ln(x, params["ln0_g"], params["ln0_b"])
    x = x + _ref_mha(params["self_attn"], xn, xn, tgt_mask, h)
    xn = _ref_ln(x, params["ln1_g"], params["ln1_b"])
    x = x + _ref_mha(params["src_attn"], xn, memory, src_mask, h)
    xn = _ref_ln(x, params["ln2_g"], params["ln2_b"])
    hid = jnp.maximum(xn.reshape(-1, x.shape[-1]) @ params["ff_w1"] + params["ff_b1"], 0.0)
    ff = (hid @ params["ff_w2"] + params["ff_b2"]).reshape(x.shape)
    return x + ff


# ------------------------------- main ---------------------------------------

def _init_params(key, D, Dff):
    ks = jax.random.split(key, 16)
    def attn_params(k4):
        k = jax.random.split(k4, 4)
        return {
            "wq": jax.random.normal(k[0], (D, D), jnp.float32) * 0.05,
            "bq": jnp.zeros((D,), jnp.float32),
            "wk": jax.random.normal(k[1], (D, D), jnp.float32) * 0.05,
            "bk": jnp.zeros((D,), jnp.float32),
            "wv": jax.random.normal(k[2], (D, D), jnp.float32) * 0.05,
            "bv": jnp.zeros((D,), jnp.float32),
            "wo": jax.random.normal(k[3], (D, D), jnp.float32) * 0.05,
            "bo": jnp.zeros((D,), jnp.float32),
        }
    return {
        "self_attn": attn_params(ks[0]),
        "src_attn": attn_params(ks[1]),
        "ff_w1": jax.random.normal(ks[2], (D, Dff), jnp.float32) * 0.05,
        "ff_b1": jnp.zeros((Dff,), jnp.float32),
        "ff_w2": jax.random.normal(ks[3], (Dff, D), jnp.float32) * 0.05,
        "ff_b2": jnp.zeros((D,), jnp.float32),
        "ln0_g": jnp.ones((D,), jnp.float32), "ln0_b": jnp.zeros((D,), jnp.float32),
        "ln1_g": jnp.ones((D,), jnp.float32), "ln1_b": jnp.zeros((D,), jnp.float32),
        "ln2_g": jnp.ones((D,), jnp.float32), "ln2_b": jnp.zeros((D,), jnp.float32),
    }


if __name__ == "__main__":
    B, T_tgt, T_src, D, H, Dff = 2, 8, 8, 32, 4, 64

    root = jax.random.PRNGKey(0)
    k_x, k_m, k_p = jax.random.split(root, 3)
    x = jax.random.normal(k_x, (B, T_tgt, D), jnp.float32)
    memory = jax.random.normal(k_m, (B, T_src, D), jnp.float32)
    params = _init_params(k_p, D, Dff)
    fused = prepare_params(params)       # QKV/KV weight fusion done once

    # tgt_mask: causal [B, T_tgt, T_tgt]; src_mask: all-visible [B, T_tgt, T_src]
    tgt_mask = jnp.broadcast_to(
        jnp.tril(jnp.ones((T_tgt, T_tgt), jnp.int32)), (B, T_tgt, T_tgt))
    src_mask = jnp.ones((B, T_tgt, T_src), jnp.int32)

    # The causal tgt mask is generated in-kernel and the all-visible src mask
    # is elided (no [T,T] DMA).  Pass the flags as False to use arbitrary
    # mask arrays via the generic masked path.
    fwd = jax.jit(functools.partial(decoder_layer, h=H,
                                    tgt_is_causal=True, src_all_visible=True))
    out = jax.block_until_ready(fwd(fused, x, memory, src_mask, tgt_mask))

    ref = _ref_decoder(params, x, memory, src_mask, tgt_mask, H)
    assert out.shape == (B, T_tgt, D)
    assert bool(jnp.all(jnp.isfinite(out)))
    assert bool(jnp.allclose(out, ref, atol=1e-4, rtol=1e-4))
    print("KERNEL_OK")
</pallas_src>

<mosaic_0001>
module attributes {stable_mosaic.version = 11 : i64} {
  func.func @_self_attn_kernel(%arg0: i32, %arg1: memref<1x8x32xf32, #tpu.memory_space<vmem>>, %arg2: memref<1x32xf32, #tpu.memory_space<vmem>>, %arg3: memref<1x32xf32, #tpu.memory_space<vmem>>, %arg4: memref<32x96xf32, #tpu.memory_space<vmem>>, %arg5: memref<1x96xf32, #tpu.memory_space<vmem>>, %arg6: memref<32x32xf32, #tpu.memory_space<vmem>>, %arg7: memref<1x32xf32, #tpu.memory_space<vmem>>, %arg8: memref<1x8x32xf32, #tpu.memory_space<vmem>>) attributes {dimension_semantics = [#tpu.dimension_semantics<parallel>], iteration_bounds = array<i64: 2>, scalar_prefetch = 0 : i64, scratch_operands = 0 : i64, tpu.core_type = #tpu.core_type<tc>, window_params = [{transform_indices = @transform_0, window_bounds = array<i64: 1, 8, 32>}, {pipeline_mode = #tpu.pipeline_mode<synchronous>, transform_indices = @transform_1, window_bounds = array<i64: 1, 32>}, {pipeline_mode = #tpu.pipeline_mode<synchronous>, transform_indices = @transform_2, window_bounds = array<i64: 1, 32>}, {pipeline_mode = #tpu.pipeline_mode<synchronous>, transform_indices = @transform_3, window_bounds = array<i64: 32, 96>}, {pipeline_mode = #tpu.pipeline_mode<synchronous>, transform_indices = @transform_4, window_bounds = array<i64: 1, 96>}, {pipeline_mode = #tpu.pipeline_mode<synchronous>, transform_indices = @transform_5, window_bounds = array<i64: 32, 32>}, {pipeline_mode = #tpu.pipeline_mode<synchronous>, transform_indices = @transform_6, window_bounds = array<i64: 1, 32>}, {transform_indices = @transform_7, window_bounds = array<i64: 1, 8, 32>}]} {
    %c0 = arith.constant 0 : index
    %c0_0 = arith.constant 0 : index
    %c0_1 = arith.constant 0 : index
    %0 = vector.load %arg1[%c0, %c0_0, %c0_1] : memref<1x8x32xf32, #tpu.memory_space<vmem>>, vector<1x8x32xf32>
    %1 = vector.shape_cast %0 : vector<1x8x32xf32> to vector<8x32xf32>
    %c0_2 = arith.constant 0 : index
    %c0_3 = arith.constant 0 : index
    %2 = vector.load %arg2[%c0_2, %c0_3] : memref<1x32xf32, #tpu.memory_space<vmem>>, vector<1x32xf32>
    %c0_4 = arith.constant 0 : index
    %c0_5 = arith.constant 0 : index
    %3 = vector.load %arg3[%c0_4, %c0_5] : memref<1x32xf32, #tpu.memory_space<vmem>>, vector<1x32xf32>
    %cst = arith.constant dense<0.000000e+00> : vector<8xf32>
    %4 = vector.multi_reduction <add>, %1, %cst [1] : vector<8x32xf32> to vector<8xf32>
    %5 = vector.shape_cast %4 : vector<8xf32> to vector<8x1xf32>
    %cst_6 = arith.constant 3.200000e+01 : f32
    %6 = vector.broadcast %cst_6 : f32 to vector<8x1xf32>
    %7 = arith.divf %5, %6 : vector<8x1xf32>
    %8 = vector.broadcast %7 : vector<8x1xf32> to vector<8x32xf32>
    %9 = arith.subf %1, %8 : vector<8x32xf32>
    %10 = arith.mulf %9, %9 : vector<8x32xf32>
    %cst_7 = arith.constant dense<0.000000e+00> : vector<8xf32>
    %11 = vector.multi_reduction <add>, %10, %cst_7 [1] : vector<8x32xf32> to vector<8xf32>
    %12 = vector.shape_cast %11 : vector<8xf32> to vector<8x1xf32>
    %cst_8 = arith.constant 0.0322580636 : f32
    %13 = vector.broadcast %cst_8 : f32 to vector<8x1xf32>
    %14 = arith.mulf %12, %13 : vector<8x1xf32>
    %15 = math.sqrt %14 : vector<8x1xf32>
    %cst_9 = arith.constant 9.99999997E-7 : f32
    %16 = vector.broadcast %cst_9 : f32 to vector<8x1xf32>
    %17 = arith.addf %15, %16 : vector<8x1xf32>
    %18 = tpu.reciprocal %17 : vector<8x1xf32> -> vector<8x1xf32>
    %19 = vector.broadcast %18 : vector<8x1xf32> to vector<8x32xf32>
    %20 = arith.mulf %9, %19 : vector<8x32xf32>
    %21 = vector.broadcast %2 : vector<1x32xf32> to vector<8x32xf32>
    %22 = arith.mulf %21, %20 : vector<8x32xf32>
    %23 = vector.broadcast %3 : vector<1x32xf32> to vector<8x32xf32>
    %24 = arith.addf %22, %23 : vector<8x32xf32>
    %c0_10 = arith.constant 0 : index
    %c0_11 = arith.constant 0 : index
    %25 = vector.load %arg4[%c0_10, %c0_11] : memref<32x96xf32, #tpu.memory_space<vmem>>, vector<32x96xf32>
    %cst_12 = arith.constant dense<0.000000e+00> : vector<8x96xf32>
    %26 = tpu.matmul %24, %25, %cst_12 {dimension_numbers = #tpu.dot_dimension_numbers<[1], [0], [0], [1], [0, 0, 1, 1], [], []>} : vector<8x32xf32>, vector<32x96xf32>, vector<8x96xf32> -> vector<8x96xf32>
    %c0_13 = arith.constant 0 : index
    %c0_14 = arith.constant 0 : index
    %27 = vector.load %arg5[%c0_13, %c0_14] : memref<1x96xf32, #tpu.memory_space<vmem>>, vector<1x96xf32>
    %28 = vector.broadcast %27 : vector<1x96xf32> to vector<8x96xf32>
    %29 = arith.addf %26, %28 : vector<8x96xf32>
    %30 = vector.extract_strided_slice %29 {offsets = [0, 0], sizes = [8, 32], strides = [1, 1]} : vector<8x96xf32> to vector<8x32xf32>
    %31 = vector.extract_strided_slice %29 {offsets = [0, 32], sizes = [8, 32], strides = [1, 1]} : vector<8x96xf32> to vector<8x32xf32>
    %32 = vector.extract_strided_slice %29 {offsets = [0, 64], sizes = [8, 32], strides = [1, 1]} : vector<8x96xf32> to vector<8x32xf32>
    %33 = tpu.iota {dimensions = array<i32: 0>} : vector<8x8xi32>
    %34 = tpu.iota {dimensions = array<i32: 1>} : vector<8x8xi32>
    %35 = arith.cmpi sgt, %34, %33 : vector<8x8xi32>
    %c0_15 = arith.constant 0 : index
    %c0_16 = arith.constant 0 : index
    %36 = vector.load %arg6[%c0_15, %c0_16] : memref<32x32xf32, #tpu.memory_space<vmem>>, vector<32x32xf32>
    %c0_17 = arith.constant 0 : index
    %c0_18 = arith.constant 0 : index
    %37 = vector.load %arg7[%c0_17, %c0_18] : memref<1x32xf32, #tpu.memory_space<vmem>>, vector<1x32xf32>
    %38 = vector.extract_strided_slice %30 {offsets = [0, 0], sizes = [8, 8], strides = [1, 1]} : vector<8x32xf32> to vector<8x8xf32>
    %39 = vector.extract_strided_slice %31 {offsets = [0, 0], sizes = [8, 8], strides = [1, 1]} : vector<8x32xf32> to vector<8x8xf32>
    %40 = vector.extract_strided_slice %32 {offsets = [0, 0], sizes = [8, 8], strides = [1, 1]} : vector<8x32xf32> to vector<8x8xf32>
    %cst_19 = arith.constant dense<0.000000e+00> : vector<8x8xf32>
    %41 = tpu.matmul %38, %39, %cst_19 {dimension_numbers = #tpu.dot_dimension_numbers<[1], [1], [0], [0], [0, 0, 1, 0], [], []>} : vector<8x8xf32>, vector<8x8xf32>, vector<8x8xf32> -> vector<8x8xf32>
    %cst_20 = arith.constant 0.353553385 : f32
    %42 = vector.broadcast %cst_20 : f32 to vector<8x8xf32>
    %43 = arith.mulf %41, %42 : vector<8x8xf32>
    %cst_21 = arith.constant -1.000000e+09 : f32
    %44 = vector.broadcast %cst_21 : f32 to vector<8x8xf32>
    %45 = arith.select %35, %44, %43 : vector<8x8xi1>, vector<8x8xf32>
    %cst_22 = arith.constant dense<0xFF800000> : vector<8xf32>
    %46 = vector.multi_reduction <maximumf>, %45, %cst_22 [1] : vector<8x8xf32> to vector<8xf32>
    %47 = vector.shape_cast %46 : vector<8xf32> to vector<8x1xf32>
    %48 = vector.broadcast %47 : vector<8x1xf32> to vector<8x8xf32>
    %49 = arith.subf %45, %48 : vector<8x8xf32>
    %50 = math.exp %49 : vector<8x8xf32>
    %cst_23 = arith.constant dense<0.000000e+00> : vector<8xf32>
    %51 = vector.multi_reduction <add>, %50, %cst_23 [1] : vector<8x8xf32> to vector<8xf32>
    %52 = vector.shape_cast %51 : vector<8xf32> to vector<8x1xf32>
    %53 = tpu.reciprocal %52 : vector<8x1xf32> -> vector<8x1xf32>
    %54 = vector.broadcast %53 : vector<8x1xf32> to vector<8x8xf32>
    %55 = arith.mulf %50, %54 : vector<8x8xf32>
    %cst_24 = arith.constant dense<0.000000e+00> : vector<8x8xf32>
    %56 = tpu.matmul %55, %40, %cst_24 {dimension_numbers = #tpu.dot_dimension_numbers<[1], [0], [0], [1], [0, 0, 1, 1], [], []>} : vector<8x8xf32>, vector<8x8xf32>, vector<8x8xf32> -> vector<8x8xf32>
    %57 = vector.extract_strided_slice %30 {offsets = [0, 8], sizes = [8, 8], strides = [1, 1]} : vector<8x32xf32> to vector<8x8xf32>
    %58 = vector.extract_strided_slice %31 {offsets = [0, 8], sizes = [8, 8], strides = [1, 1]} : vector<8x32xf32> to vector<8x8xf32>
    %59 = vector.extract_strided_slice %32 {offsets = [0, 8], sizes = [8, 8], strides = [1, 1]} : vector<8x32xf32> to vector<8x8xf32>
    %cst_25 = arith.constant dense<0.000000e+00> : vector<8x8xf32>
    %60 = tpu.matmul %57, %58, %cst_25 {dimension_numbers = #tpu.dot_dimension_numbers<[1], [1], [0], [0], [0, 0, 1, 0], [], []>} : vector<8x8xf32>, vector<8x8xf32>, vector<8x8xf32> -> vector<8x8xf32>
    %cst_26 = arith.constant 0.353553385 : f32
    %61 = vector.broadcast %cst_26 : f32 to vector<8x8xf32>
    %62 = arith.mulf %60, %61 : vector<8x8xf32>
    %cst_27 = arith.constant -1.000000e+09 : f32
    %63 = vector.broadcast %cst_27 : f32 to vector<8x8xf32>
    %64 = arith.select %35, %63, %62 : vector<8x8xi1>, vector<8x8xf32>
    %cst_28 = arith.constant dense<0xFF800000> : vector<8xf32>
    %65 = vector.multi_reduction <maximumf>, %64, %cst_28 [1] : vector<8x8xf32> to vector<8xf32>
    %66 = vector.shape_cast %65 : vector<8xf32> to vector<8x1xf32>
    %67 = vector.broadcast %66 : vector<8x1xf32> to vector<8x8xf32>
    %68 = arith.subf %64, %67 : vector<8x8xf32>
    %69 = math.exp %68 : vector<8x8xf32>
    %cst_29 = arith.constant dense<0.000000e+00> : vector<8xf32>
    %70 = vector.multi_reduction <add>, %69, %cst_29 [1] : vector<8x8xf32> to vector<8xf32>
    %71 = vector.shape_cast %70 : vector<8xf32> to vector<8x1xf32>
    %72 = tpu.reciprocal %71 : vector<8x1xf32> -> vector<8x1xf32>
    %73 = vector.broadcast %72 : vector<8x1xf32> to vector<8x8xf32>
    %74 = arith.mulf %69, %73 : vector<8x8xf32>
    %cst_30 = arith.constant dense<0.000000e+00> : vector<8x8xf32>
    %75 = tpu.matmul %74, %59, %cst_30 {dimension_numbers = #tpu.dot_dimension_numbers<[1], [0], [0], [1], [0, 0, 1, 1], [], []>} : vector<8x8xf32>, vector<8x8xf32>, vector<8x8xf32> -> vector<8x8xf32>
    %76 = vector.extract_strided_slice %30 {offsets = [0, 16], sizes = [8, 8], strides = [1, 1]} : vector<8x32xf32> to vector<8x8xf32>
    %77 = vector.extract_strided_slice %31 {offsets = [0, 16], sizes = [8, 8], strides = [1, 1]} : vector<8x32xf32> to vector<8x8xf32>
    %78 = vector.extract_strided_slice %32 {offsets = [0, 16], sizes = [8, 8], strides = [1, 1]} : vector<8x32xf32> to vector<8x8xf32>
    %cst_31 = arith.constant dense<0.000000e+00> : vector<8x8xf32>
    %79 = tpu.matmul %76, %77, %cst_31 {dimension_numbers = #tpu.dot_dimension_numbers<[1], [1], [0], [0], [0, 0, 1, 0], [], []>} : vector<8x8xf32>, vector<8x8xf32>, vector<8x8xf32> -> vector<8x8xf32>
    %cst_32 = arith.constant 0.353553385 : f32
    %80 = vector.broadcast %cst_32 : f32 to vector<8x8xf32>
    %81 = arith.mulf %79, %80 : vector<8x8xf32>
    %cst_33 = arith.constant -1.000000e+09 : f32
    %82 = vector.broadcast %cst_33 : f32 to vector<8x8xf32>
    %83 = arith.select %35, %82, %81 : vector<8x8xi1>, vector<8x8xf32>
    %cst_34 = arith.constant dense<0xFF800000> : vector<8xf32>
    %84 = vector.multi_reduction <maximumf>, %83, %cst_34 [1] : vector<8x8xf32> to vector<8xf32>
    %85 = vector.shape_cast %84 : vector<8xf32> to vector<8x1xf32>
    %86 = vector.broadcast %85 : vector<8x1xf32> to vector<8x8xf32>
    %87 = arith.subf %83, %86 : vector<8x8xf32>
    %88 = math.exp %87 : vector<8x8xf32>
    %cst_35 = arith.constant dense<0.000000e+00> : vector<8xf32>
    %89 = vector.multi_reduction <add>, %88, %cst_35 [1] : vector<8x8xf32> to vector<8xf32>
    %90 = vector.shape_cast %89 : vector<8xf32> to vector<8x1xf32>
    %91 = tpu.reciprocal %90 : vector<8x1xf32> -> vector<8x1xf32>
    %92 = vector.broadcast %91 : vector<8x1xf32> to vector<8x8xf32>
    %93 = arith.mulf %88, %92 : vector<8x8xf32>
    %cst_36 = arith.constant dense<0.000000e+00> : vector<8x8xf32>
    %94 = tpu.matmul %93, %78, %cst_36 {dimension_numbers = #tpu.dot_dimension_numbers<[1], [0], [0], [1], [0, 0, 1, 1], [], []>} : vector<8x8xf32>, vector<8x8xf32>, vector<8x8xf32> -> vector<8x8xf32>
    %95 = vector.extract_strided_slice %30 {offsets = [0, 24], sizes = [8, 8], strides = [1, 1]} : vector<8x32xf32> to vector<8x8xf32>
    %96 = vector.extract_strided_slice %31 {offsets = [0, 24], sizes = [8, 8], strides = [1, 1]} : vector<8x32xf32> to vector<8x8xf32>
    %97 = vector.extract_strided_slice %32 {offsets = [0, 24], sizes = [8, 8], strides = [1, 1]} : vector<8x32xf32> to vector<8x8xf32>
    %cst_37 = arith.constant dense<0.000000e+00> : vector<8x8xf32>
    %98 = tpu.matmul %95, %96, %cst_37 {dimension_numbers = #tpu.dot_dimension_numbers<[1], [1], [0], [0], [0, 0, 1, 0], [], []>} : vector<8x8xf32>, vector<8x8xf32>, vector<8x8xf32> -> vector<8x8xf32>
    %cst_38 = arith.constant 0.353553385 : f32
    %99 = vector.broadcast %cst_38 : f32 to vector<8x8xf32>
    %100 = arith.mulf %98, %99 : vector<8x8xf32>
    %cst_39 = arith.constant -1.000000e+09 : f32
    %101 = vector.broadcast %cst_39 : f32 to vector<8x8xf32>
    %102 = arith.select %35, %101, %100 : vector<8x8xi1>, vector<8x8xf32>
    %cst_40 = arith.constant dense<0xFF800000> : vector<8xf32>
    %103 = vector.multi_reduction <maximumf>, %102, %cst_40 [1] : vector<8x8xf32> to vector<8xf32>
    %104 = vector.shape_cast %103 : vector<8xf32> to vector<8x1xf32>
    %105 = vector.broadcast %104 : vector<8x1xf32> to vector<8x8xf32>
    %106 = arith.subf %102, %105 : vector<8x8xf32>
    %107 = math.exp %106 : vector<8x8xf32>
    %cst_41 = arith.constant dense<0.000000e+00> : vector<8xf32>
    %108 = vector.multi_reduction <add>, %107, %cst_41 [1] : vector<8x8xf32> to vector<8xf32>
    %109 = vector.shape_cast %108 : vector<8xf32> to vector<8x1xf32>
    %110 = tpu.reciprocal %109 : vector<8x1xf32> -> vector<8x1xf32>
    %111 = vector.broadcast %110 : vector<8x1xf32> to vector<8x8xf32>
    %112 = arith.mulf %107, %111 : vector<8x8xf32>
    %cst_42 = arith.constant dense<0.000000e+00> : vector<8x8xf32>
    %113 = tpu.matmul %112, %97, %cst_42 {dimension_numbers = #tpu.dot_dimension_numbers<[1], [0], [0], [1], [0, 0, 1, 1], [], []>} : vector<8x8xf32>, vector<8x8xf32>, vector<8x8xf32> -> vector<8x8xf32>
    %114 = tpu.concatenate %56, %75, %94, %113 in 1 : vector<8x8xf32>, vector<8x8xf32>, vector<8x8xf32>, vector<8x8xf32> -> vector<8x32xf32>
    %cst_43 = arith.constant dense<0.000000e+00> : vector<8x32xf32>
    %115 = tpu.matmul %114, %36, %cst_43 {dimension_numbers = #tpu.dot_dimension_numbers<[1], [0], [0], [1], [0, 0, 1, 1], [], []>} : vector<8x32xf32>, vector<32x32xf32>, vector<8x32xf32> -> vector<8x32xf32>
    %116 = vector.broadcast %37 : vector<1x32xf32> to vector<8x32xf32>
    %117 = arith.addf %115, %116 : vector<8x32xf32>
    %118 = arith.addf %1, %117 : vector<8x32xf32>
    %c0_44 = arith.constant 0 : index
    %c0_45 = arith.constant 0 : index
    %c0_46 = arith.constant 0 : index
    %119 = vector.load %arg8[%c0_44, %c0_45, %c0_46] : memref<1x8x32xf32, #tpu.memory_space<vmem>>, vector<1x8x32xf32>
    %120 = vector.shape_cast %119 : vector<1x8x32xf32> to vector<8x32xf32>
    %121 = vector.shape_cast %118 : vector<8x32xf32> to vector<1x8x32xf32>
    tpu.vector_store %arg8[%c0_44, %c0_45, %c0_46], %121 {strides = array<i32>} : memref<1x8x32xf32, #tpu.memory_space<vmem>>, vector<1x8x32xf32>,
    return
  }
  func.func @transform_0(%arg0: i32) -> (i32, i32, i32) {
    %c0_i32 = arith.constant 0 : i32
    %c0_i32_0 = arith.constant 0 : i32
    %c0_i32_1 = arith.constant 0 : i32
    return %arg0, %c0_i32, %c0_i32_0 : i32, i32, i32
  }
  func.func @transform_1(%arg0: i32) -> (i32, i32) {
    %c0_i32 = arith.constant 0 : i32
    %c0_i32_0 = arith.constant 0 : i32
    %c0_i32_1 = arith.constant 0 : i32
    return %c0_i32, %c0_i32_0 : i32, i32
  }
  func.func @transform_2(%arg0: i32) -> (i32, i32) {
    %c0_i32 = arith.constant 0 : i32
    %c0_i32_0 = arith.constant 0 : i32
    %c0_i32_1 = arith.constant 0 : i32
    return %c0_i32, %c0_i32_0 : i32, i32
  }
  func.func @transform_3(%arg0: i32) -> (i32, i32) {
    %c0_i32 = arith.constant 0 : i32
    %c0_i32_0 = arith.constant 0 : i32
    %c0_i32_1 = arith.constant 0 : i32
    return %c0_i32, %c0_i32_0 : i32, i32
  }
  func.func @transform_4(%arg0: i32) -> (i32, i32) {
    %c0_i32 = arith.constant 0 : i32
    %c0_i32_0 = arith.constant 0 : i32
    %c0_i32_1 = arith.constant 0 : i32
    return %c0_i32, %c0_i32_0 : i32, i32
  }
  func.func @transform_5(%arg0: i32) -> (i32, i32) {
    %c0_i32 = arith.constant 0 : i32
    %c0_i32_0 = arith.constant 0 : i32
    %c0_i32_1 = arith.constant 0 : i32
    return %c0_i32, %c0_i32_0 : i32, i32
  }
  func.func @transform_6(%arg0: i32) -> (i32, i32) {
    %c0_i32 = arith.constant 0 : i32
    %c0_i32_0 = arith.constant 0 : i32
    %c0_i32_1 = arith.constant 0 : i32
    return %c0_i32, %c0_i32_0 : i32, i32
  }
  func.func @transform_7(%arg0: i32) -> (i32, i32, i32) {
    %c0_i32 = arith.constant 0 : i32
    %c0_i32_0 = arith.constant 0 : i32
    %c0_i32_1 = arith.constant 0 : i32
    return %arg0, %c0_i32, %c0_i32_0 : i32, i32, i32
  }
}

module attributes {stable_mosaic.version = 11 : i64} {
  func.func @_src_attn_kernel(%arg0: i32, %arg1: memref<1x8x32xf32, #tpu.memory_space<vmem>>, %arg2: memref<1x8x32xf32, #tpu.memory_space<vmem>>, %arg3: memref<1x32xf32, #tpu.memory_space<vmem>>, %arg4: memref<1x32xf32, #tpu.memory_space<vmem>>, %arg5: memref<32x32xf32, #tpu.memory_space<vmem>>, %arg6: memref<1x32xf32, #tpu.memory_space<vmem>>, %arg7: memref<32x64xf32, #tpu.memory_space<vmem>>, %arg8: memref<1x64xf32, #tpu.memory_space<vmem>>, %arg9: memref<32x32xf32, #tpu.memory_space<vmem>>, %arg10: memref<1x32xf32, #tpu.memory_space<vmem>>, %arg11: memref<1x8x32xf32, #tpu.memory_space<vmem>>) attributes {dimension_semantics = [#tpu.dimension_semantics<parallel>], iteration_bounds = array<i64: 2>, scalar_prefetch = 0 : i64, scratch_operands = 0 : i64, tpu.core_type = #tpu.core_type<tc>, window_params = [{transform_indices = @transform_0, window_bounds = array<i64: 1, 8, 32>}, {transform_indices = @transform_1, window_bounds = array<i64: 1, 8, 32>}, {pipeline_mode = #tpu.pipeline_mode<synchronous>, transform_indices = @transform_2, window_bounds = array<i64: 1, 32>}, {pipeline_mode = #tpu.pipeline_mode<synchronous>, transform_indices = @transform_3, window_bounds = array<i64: 1, 32>}, {pipeline_mode = #tpu.pipeline_mode<synchronous>, transform_indices = @transform_4, window_bounds = array<i64: 32, 32>}, {pipeline_mode = #tpu.pipeline_mode<synchronous>, transform_indices = @transform_5, window_bounds = array<i64: 1, 32>}, {pipeline_mode = #tpu.pipeline_mode<synchronous>, transform_indices = @transform_6, window_bounds = array<i64: 32, 64>}, {pipeline_mode = #tpu.pipeline_mode<synchronous>, transform_indices = @transform_7, window_bounds = array<i64: 1, 64>}, {pipeline_mode = #tpu.pipeline_mode<synchronous>, transform_indices = @transform_8, window_bounds = array<i64: 32, 32>}, {pipeline_mode = #tpu.pipeline_mode<synchronous>, transform_indices = @transform_9, window_bounds = array<i64: 1, 32>}, {transform_indices = @transform_10, window_bounds = array<i64: 1, 8, 32>}]} {
    %c0 = arith.constant 0 : index
    %c0_0 = arith.constant 0 : index
    %c0_1 = arith.constant 0 : index
    %0 = vector.load %arg1[%c0, %c0_0, %c0_1] : memref<1x8x32xf32, #tpu.memory_space<vmem>>, vector<1x8x32xf32>
    %1 = vector.shape_cast %0 : vector<1x8x32xf32> to vector<8x32xf32>
    %c0_2 = arith.constant 0 : index
    %c0_3 = arith.constant 0 : index
    %2 = vector.load %arg3[%c0_2, %c0_3] : memref<1x32xf32, #tpu.memory_space<vmem>>, vector<1x32xf32>
    %c0_4 = arith.constant 0 : index
    %c0_5 = arith.constant 0 : index
    %3 = vector.load %arg4[%c0_4, %c0_5] : memref<1x32xf32, #tpu.memory_space<vmem>>, vector<1x32xf32>
    %cst = arith.constant dense<0.000000e+00> : vector<8xf32>
    %4 = vector.multi_reduction <add>, %1, %cst [1] : vector<8x32xf32> to vector<8xf32>
    %5 = vector.shape_cast %4 : vector<8xf32> to vector<8x1xf32>
    %cst_6 = arith.constant 3.200000e+01 : f32
    %6 = vector.broadcast %cst_6 : f32 to vector<8x1xf32>
    %7 = arith.divf %5, %6 : vector<8x1xf32>
    %8 = vector.broadcast %7 : vector<8x1xf32> to vector<8x32xf32>
    %9 = arith.subf %1, %8 : vector<8x32xf32>
    %10 = arith.mulf %9, %9 : vector<8x32xf32>
    %cst_7 = arith.constant dense<0.000000e+00> : vector<8xf32>
    %11 = vector.multi_reduction <add>, %10, %cst_7 [1] : vector<8x32xf32> to vector<8xf32>
    %12 = vector.shape_cast %11 : vector<8xf32> to vector<8x1xf32>
    %cst_8 = arith.constant 0.0322580636 : f32
    %13 = vector.broadcast %cst_8 : f32 to vector<8x1xf32>
    %14 = arith.mulf %12, %13 : vector<8x1xf32>
    %15 = math.sqrt %14 : vector<8x1xf32>
    %cst_9 = arith.constant 9.99999997E-7 : f32
    %16 = vector.broadcast %cst_9 : f32 to vector<8x1xf32>
    %17 = arith.addf %15, %16 : vector<8x1xf32>
    %18 = tpu.reciprocal %17 : vector<8x1xf32> -> vector<8x1xf32>
    %19 = vector.broadcast %18 : vector<8x1xf32> to vector<8x32xf32>
    %20 = arith.mulf %9, %19 : vector<8x32xf32>
    %21 = vector.broadcast %2 : vector<1x32xf32> to vector<8x32xf32>
    %22 = arith.mulf %21, %20 : vector<8x32xf32>
    %23 = vector.broadcast %3 : vector<1x32xf32> to vector<8x32xf32>
    %24 = arith.addf %22, %23 : vector<8x32xf32>
    %c0_10 = arith.constant 0 : index
    %c0_11 = arith.constant 0 : index
    %25 = vector.load %arg5[%c0_10, %c0_11] : memref<32x32xf32, #tpu.memory_space<vmem>>, vector<32x32xf32>
    %cst_12 = arith.constant dense<0.000000e+00> : vector<8x32xf32>
    %26 = tpu.matmul %24, %25, %cst_12 {dimension_numbers = #tpu.dot_dimension_numbers<[1], [0], [0], [1], [0, 0, 1, 1], [], []>} : vector<8x32xf32>, vector<32x32xf32>, vector<8x32xf32> -> vector<8x32xf32>
    %c0_13 = arith.constant 0 : index
    %c0_14 = arith.constant 0 : index
    %27 = vector.load %arg6[%c0_13, %c0_14] : memref<1x32xf32, #tpu.memory_space<vmem>>, vector<1x32xf32>
    %28 = vector.broadcast %27 : vector<1x32xf32> to vector<8x32xf32>
    %29 = arith.addf %26, %28 : vector<8x32xf32>
    %c0_15 = arith.constant 0 : index
    %c0_16 = arith.constant 0 : index
    %c0_17 = arith.constant 0 : index
    %30 = vector.load %arg2[%c0_15, %c0_16, %c0_17] : memref<1x8x32xf32, #tpu.memory_space<vmem>>, vector<1x8x32xf32>
    %31 = vector.shape_cast %30 : vector<1x8x32xf32> to vector<8x32xf32>
    %c0_18 = arith.constant 0 : index
    %c0_19 = arith.constant 0 : index
    %32 = vector.load %arg7[%c0_18, %c0_19] : memref<32x64xf32, #tpu.memory_space<vmem>>, vector<32x64xf32>
    %cst_20 = arith.constant dense<0.000000e+00> : vector<8x64xf32>
    %33 = tpu.matmul %31, %32, %cst_20 {dimension_numbers = #tpu.dot_dimension_numbers<[1], [0], [0], [1], [0, 0, 1, 1], [], []>} : vector<8x32xf32>, vector<32x64xf32>, vector<8x64xf32> -> vector<8x64xf32>
    %c0_21 = arith.constant 0 : index
    %c0_22 = arith.constant 0 : index
    %34 = vector.load %arg8[%c0_21, %c0_22] : memref<1x64xf32, #tpu.memory_space<vmem>>, vector<1x64xf32>
    %35 = vector.broadcast %34 : vector<1x64xf32> to vector<8x64xf32>
    %36 = arith.addf %33, %35 : vector<8x64xf32>
    %37 = vector.extract_strided_slice %36 {offsets = [0, 0], sizes = [8, 32], strides = [1, 1]} : vector<8x64xf32> to vector<8x32xf32>
    %38 = vector.extract_strided_slice %36 {offsets = [0, 32], sizes = [8, 32], strides = [1, 1]} : vector<8x64xf32> to vector<8x32xf32>
    %c0_23 = arith.constant 0 : index
    %c0_24 = arith.constant 0 : index
    %39 = vector.load %arg9[%c0_23, %c0_24] : memref<32x32xf32, #tpu.memory_space<vmem>>, vector<32x32xf32>
    %c0_25 = arith.constant 0 : index
    %c0_26 = arith.constant 0 : index
    %40 = vector.load %arg10[%c0_25, %c0_26] : memref<1x32xf32, #tpu.memory_space<vmem>>, vector<1x32xf32>
    %41 = vector.extract_strided_slice %29 {offsets = [0, 0], sizes = [8, 8], strides = [1, 1]} : vector<8x32xf32> to vector<8x8xf32>
    %42 = vector.extract_strided_slice %37 {offsets = [0, 0], sizes = [8, 8], strides = [1, 1]} : vector<8x32xf32> to vector<8x8xf32>
    %43 = vector.extract_strided_slice %38 {offsets = [0, 0], sizes = [8, 8], strides = [1, 1]} : vector<8x32xf32> to vector<8x8xf32>
    %cst_27 = arith.constant dense<0.000000e+00> : vector<8x8xf32>
    %44 = tpu.matmul %41, %42, %cst_27 {dimension_numbers = #tpu.dot_dimension_numbers<[1], [1], [0], [0], [0, 0, 1, 0], [], []>} : vector<8x8xf32>, vector<8x8xf32>, vector<8x8xf32> -> vector<8x8xf32>
    %cst_28 = arith.constant 0.353553385 : f32
    %45 = vector.broadcast %cst_28 : f32 to vector<8x8xf32>
    %46 = arith.mulf %44, %45 : vector<8x8xf32>
    %cst_29 = arith.constant dense<0xFF800000> : vector<8xf32>
    %47 = vector.multi_reduction <maximumf>, %46, %cst_29 [1] : vector<8x8xf32> to vector<8xf32>
    %48 = vector.shape_cast %47 : vector<8xf32> to vector<8x1xf32>
    %49 = vector.broadcast %48 : vector<8x1xf32> to vector<8x8xf32>
    %50 = arith.subf %46, %49 : vector<8x8xf32>
    %51 = math.exp %50 : vector<8x8xf32>
    %cst_30 = arith.constant dense<0.000000e+00> : vector<8xf32>
    %52 = vector.multi_reduction <add>, %51, %cst_30 [1] : vector<8x8xf32> to vector<8xf32>
    %53 = vector.shape_cast %52 : vector<8xf32> to vector<8x1xf32>
    %54 = tpu.reciprocal %53 : vector<8x1xf32> -> vector<8x1xf32>
    %55 = vector.broadcast %54 : vector<8x1xf32> to vector<8x8xf32>
    %56 = arith.mulf %51, %55 : vector<8x8xf32>
    %cst_31 = arith.constant dense<0.000000e+00> : vector<8x8xf32>
    %57 = tpu.matmul %56, %43, %cst_31 {dimension_numbers = #tpu.dot_dimension_numbers<[1], [0], [0], [1], [0, 0, 1, 1], [], []>} : vector<8x8xf32>, vector<8x8xf32>, vector<8x8xf32> -> vector<8x8xf32>
    %58 = vector.extract_strided_slice %29 {offsets = [0, 8], sizes = [8, 8], strides = [1, 1]} : vector<8x32xf32> to vector<8x8xf32>
    %59 = vector.extract_strided_slice %37 {offsets = [0, 8], sizes = [8, 8], strides = [1, 1]} : vector<8x32xf32> to vector<8x8xf32>
    %60 = vector.extract_strided_slice %38 {offsets = [0, 8], sizes = [8, 8], strides = [1, 1]} : vector<8x32xf32> to vector<8x8xf32>
    %cst_32 = arith.constant dense<0.000000e+00> : vector<8x8xf32>
    %61 = tpu.matmul %58, %59, %cst_32 {dimension_numbers = #tpu.dot_dimension_numbers<[1], [1], [0], [0], [0, 0, 1, 0], [], []>} : vector<8x8xf32>, vector<8x8xf32>, vector<8x8xf32> -> vector<8x8xf32>
    %cst_33 = arith.constant 0.353553385 : f32
    %62 = vector.broadcast %cst_33 : f32 to vector<8x8xf32>
    %63 = arith.mulf %61, %62 : vector<8x8xf32>
    %cst_34 = arith.constant dense<0xFF800000> : vector<8xf32>
    %64 = vector.multi_reduction <maximumf>, %63, %cst_34 [1] : vector<8x8xf32> to vector<8xf32>
    %65 = vector.shape_cast %64 : vector<8xf32> to vector<8x1xf32>
    %66 = vector.broadcast %65 : vector<8x1xf32> to vector<8x8xf32>
    %67 = arith.subf %63, %66 : vector<8x8xf32>
    %68 = math.exp %67 : vector<8x8xf32>
    %cst_35 = arith.constant dense<0.000000e+00> : vector<8xf32>
    %69 = vector.multi_reduction <add>, %68, %cst_35 [1] : vector<8x8xf32> to vector<8xf32>
    %70 = vector.shape_cast %69 : vector<8xf32> to vector<8x1xf32>
    %71 = tpu.reciprocal %70 : vector<8x1xf32> -> vector<8x1xf32>
    %72 = vector.broadcast %71 : vector<8x1xf32> to vector<8x8xf32>
    %73 = arith.mulf %68, %72 : vector<8x8xf32>
    %cst_36 = arith.constant dense<0.000000e+00> : vector<8x8xf32>
    %74 = tpu.matmul %73, %60, %cst_36 {dimension_numbers = #tpu.dot_dimension_numbers<[1], [0], [0], [1], [0, 0, 1, 1], [], []>} : vector<8x8xf32>, vector<8x8xf32>, vector<8x8xf32> -> vector<8x8xf32>
    %75 = vector.extract_strided_slice %29 {offsets = [0, 16], sizes = [8, 8], strides = [1, 1]} : vector<8x32xf32> to vector<8x8xf32>
    %76 = vector.extract_strided_slice %37 {offsets = [0, 16], sizes = [8, 8], strides = [1, 1]} : vector<8x32xf32> to vector<8x8xf32>
    %77 = vector.extract_strided_slice %38 {offsets = [0, 16], sizes = [8, 8], strides = [1, 1]} : vector<8x32xf32> to vector<8x8xf32>
    %cst_37 = arith.constant dense<0.000000e+00> : vector<8x8xf32>
    %78 = tpu.matmul %75, %76, %cst_37 {dimension_numbers = #tpu.dot_dimension_numbers<[1], [1], [0], [0], [0, 0, 1, 0], [], []>} : vector<8x8xf32>, vector<8x8xf32>, vector<8x8xf32> -> vector<8x8xf32>
    %cst_38 = arith.constant 0.353553385 : f32
    %79 = vector.broadcast %cst_38 : f32 to vector<8x8xf32>
    %80 = arith.mulf %78, %79 : vector<8x8xf32>
    %cst_39 = arith.constant dense<0xFF800000> : vector<8xf32>
    %81 = vector.multi_reduction <maximumf>, %80, %cst_39 [1] : vector<8x8xf32> to vector<8xf32>
    %82 = vector.shape_cast %81 : vector<8xf32> to vector<8x1xf32>
    %83 = vector.broadcast %82 : vector<8x1xf32> to vector<8x8xf32>
    %84 = arith.subf %80, %83 : vector<8x8xf32>
    %85 = math.exp %84 : vector<8x8xf32>
    %cst_40 = arith.constant dense<0.000000e+00> : vector<8xf32>
    %86 = vector.multi_reduction <add>, %85, %cst_40 [1] : vector<8x8xf32> to vector<8xf32>
    %87 = vector.shape_cast %86 : vector<8xf32> to vector<8x1xf32>
    %88 = tpu.reciprocal %87 : vector<8x1xf32> -> vector<8x1xf32>
    %89 = vector.broadcast %88 : vector<8x1xf32> to vector<8x8xf32>
    %90 = arith.mulf %85, %89 : vector<8x8xf32>
    %cst_41 = arith.constant dense<0.000000e+00> : vector<8x8xf32>
    %91 = tpu.matmul %90, %77, %cst_41 {dimension_numbers = #tpu.dot_dimension_numbers<[1], [0], [0], [1], [0, 0, 1, 1], [], []>} : vector<8x8xf32>, vector<8x8xf32>, vector<8x8xf32> -> vector<8x8xf32>
    %92 = vector.extract_strided_slice %29 {offsets = [0, 24], sizes = [8, 8], strides = [1, 1]} : vector<8x32xf32> to vector<8x8xf32>
    %93 = vector.extract_strided_slice %37 {offsets = [0, 24], sizes = [8, 8], strides = [1, 1]} : vector<8x32xf32> to vector<8x8xf32>
    %94 = vector.extract_strided_slice %38 {offsets = [0, 24], sizes = [8, 8], strides = [1, 1]} : vector<8x32xf32> to vector<8x8xf32>
    %cst_42 = arith.constant dense<0.000000e+00> : vector<8x8xf32>
    %95 = tpu.matmul %92, %93, %cst_42 {dimension_numbers = #tpu.dot_dimension_numbers<[1], [1], [0], [0], [0, 0, 1, 0], [], []>} : vector<8x8xf32>, vector<8x8xf32>, vector<8x8xf32> -> vector<8x8xf32>
    %cst_43 = arith.constant 0.353553385 : f32
    %96 = vector.broadcast %cst_43 : f32 to vector<8x8xf32>
    %97 = arith.mulf %95, %96 : vector<8x8xf32>
    %cst_44 = arith.constant dense<0xFF800000> : vector<8xf32>
    %98 = vector.multi_reduction <maximumf>, %97, %cst_44 [1] : vector<8x8xf32> to vector<8xf32>
    %99 = vector.shape_cast %98 : vector<8xf32> to vector<8x1xf32>
    %100 = vector.broadcast %99 : vector<8x1xf32> to vector<8x8xf32>
    %101 = arith.subf %97, %100 : vector<8x8xf32>
    %102 = math.exp %101 : vector<8x8xf32>
    %cst_45 = arith.constant dense<0.000000e+00> : vector<8xf32>
    %103 = vector.multi_reduction <add>, %102, %cst_45 [1] : vector<8x8xf32> to vector<8xf32>
    %104 = vector.shape_cast %103 : vector<8xf32> to vector<8x1xf32>
    %105 = tpu.reciprocal %104 : vector<8x1xf32> -> vector<8x1xf32>
    %106 = vector.broadcast %105 : vector<8x1xf32> to vector<8x8xf32>
    %107 = arith.mulf %102, %106 : vector<8x8xf32>
    %cst_46 = arith.constant dense<0.000000e+00> : vector<8x8xf32>
    %108 = tpu.matmul %107, %94, %cst_46 {dimension_numbers = #tpu.dot_dimension_numbers<[1], [0], [0], [1], [0, 0, 1, 1], [], []>} : vector<8x8xf32>, vector<8x8xf32>, vector<8x8xf32> -> vector<8x8xf32>
    %109 = tpu.concatenate %57, %74, %91, %108 in 1 : vector<8x8xf32>, vector<8x8xf32>, vector<8x8xf32>, vector<8x8xf32> -> vector<8x32xf32>
    %cst_47 = arith.constant dense<0.000000e+00> : vector<8x32xf32>
    %110 = tpu.matmul %109, %39, %cst_47 {dimension_numbers = #tpu.dot_dimension_numbers<[1], [0], [0], [1], [0, 0, 1, 1], [], []>} : vector<8x32xf32>, vector<32x32xf32>, vector<8x32xf32> -> vector<8x32xf32>
    %111 = vector.broadcast %40 : vector<1x32xf32> to vector<8x32xf32>
    %112 = arith.addf %110, %111 : vector<8x32xf32>
    %113 = arith.addf %1, %112 : vector<8x32xf32>
    %c0_48 = arith.constant 0 : index
    %c0_49 = arith.constant 0 : index
    %c0_50 = arith.constant 0 : index
    %114 = vector.load %arg11[%c0_48, %c0_49, %c0_50] : memref<1x8x32xf32, #tpu.memory_space<vmem>>, vector<1x8x32xf32>
    %115 = vector.shape_cast %114 : vector<1x8x32xf32> to vector<8x32xf32>
    %116 = vector.shape_cast %113 : vector<8x32xf32> to vector<1x8x32xf32>
    tpu.vector_store %arg11[%c0_48, %c0_49, %c0_50], %116 {strides = array<i32>} : memref<1x8x32xf32, #tpu.memory_space<vmem>>, vector<1x8x32xf32>,
    return
  }
  func.func @transform_0(%arg0: i32) -> (i32, i32, i32) {
    %c0_i32 = arith.constant 0 : i32
    %c0_i32_0 = arith.constant 0 : i32
    %c0_i32_1 = arith.constant 0 : i32
    return %arg0, %c0_i32, %c0_i32_0 : i32, i32, i32
  }
  func.func @transform_1(%arg0: i32) -> (i32, i32, i32) {
    %c0_i32 = arith.constant 0 : i32
    %c0_i32_0 = arith.constant 0 : i32
    %c0_i32_1 = arith.constant 0 : i32
    return %arg0, %c0_i32, %c0_i32_0 : i32, i32, i32
  }
  func.func @transform_2(%arg0: i32) -> (i32, i32) {
    %c0_i32 = arith.constant 0 : i32
    %c0_i32_0 = arith.constant 0 : i32
    %c0_i32_1 = arith.constant 0 : i32
    return %c0_i32, %c0_i32_0 : i32, i32
  }
  func.func @transform_3(%arg0: i32) -> (i32, i32) {
    %c0_i32 = arith.constant 0 : i32
    %c0_i32_0 = arith.constant 0 : i32
    %c0_i32_1 = arith.constant 0 : i32
    return %c0_i32, %c0_i32_0 : i32, i32
  }
  func.func @transform_4(%arg0: i32) -> (i32, i32) {
    %c0_i32 = arith.constant 0 : i32
    %c0_i32_0 = arith.constant 0 : i32
    %c0_i32_1 = arith.constant 0 : i32
    return %c0_i32, %c0_i32_0 : i32, i32
  }
  func.func @transform_5(%arg0: i32) -> (i32, i32) {
    %c0_i32 = arith.constant 0 : i32
    %c0_i32_0 = arith.constant 0 : i32
    %c0_i32_1 = arith.constant 0 : i32
    return %c0_i32, %c0_i32_0 : i32, i32
  }
  func.func @transform_6(%arg0: i32) -> (i32, i32) {
    %c0_i32 = arith.constant 0 : i32
    %c0_i32_0 = arith.constant 0 : i32
    %c0_i32_1 = arith.constant 0 : i32
    return %c0_i32, %c0_i32_0 : i32, i32
  }
  func.func @transform_7(%arg0: i32) -> (i32, i32) {
    %c0_i32 = arith.constant 0 : i32
    %c0_i32_0 = arith.constant 0 : i32
    %c0_i32_1 = arith.constant 0 : i32
    return %c0_i32, %c0_i32_0 : i32, i32
  }
  func.func @transform_8(%arg0: i32) -> (i32, i32) {
    %c0_i32 = arith.constant 0 : i32
    %c0_i32_0 = arith.constant 0 : i32
    %c0_i32_1 = arith.constant 0 : i32
    return %c0_i32, %c0_i32_0 : i32, i32
  }
  func.func @transform_9(%arg0: i32) -> (i32, i32) {
    %c0_i32 = arith.constant 0 : i32
    %c0_i32_0 = arith.constant 0 : i32
    %c0_i32_1 = arith.constant 0 : i32
    return %c0_i32, %c0_i32_0 : i32, i32
  }
  func.func @transform_10(%arg0: i32) -> (i32, i32, i32) {
    %c0_i32 = arith.constant 0 : i32
    %c0_i32_0 = arith.constant 0 : i32
    %c0_i32_1 = arith.constant 0 : i32
    return %arg0, %c0_i32, %c0_i32_0 : i32, i32, i32
  }
}

module attributes {stable_mosaic.version = 11 : i64} {
  func.func @_ffn_kernel(%arg0: i32, %arg1: i32, %arg2: memref<16x32xf32, #tpu.memory_space<vmem>>, %arg3: memref<1x32xf32, #tpu.memory_space<vmem>>, %arg4: memref<1x32xf32, #tpu.memory_space<vmem>>, %arg5: memref<32x64xf32, #tpu.memory_space<vmem>>, %arg6: memref<1x64xf32, #tpu.memory_space<vmem>>, %arg7: memref<64x32xf32, #tpu.memory_space<vmem>>, %arg8: memref<1x32xf32, #tpu.memory_space<vmem>>, %arg9: memref<16x32xf32, #tpu.memory_space<vmem>>, %arg10: memref<16x32xf32, #tpu.memory_space<vmem>>, %arg11: memref<16x32xf32, #tpu.memory_space<vmem>>) attributes {dimension_semantics = [#tpu.dimension_semantics<parallel>, #tpu.dimension_semantics<arbitrary>], iteration_bounds = array<i64: 1, 1>, scalar_prefetch = 0 : i64, scratch_operands = 2 : i64, tpu.core_type = #tpu.core_type<tc>, window_params = [{transform_indices = @transform_0, window_bounds = array<i64: 16, 32>}, {pipeline_mode = #tpu.pipeline_mode<synchronous>, transform_indices = @transform_1, window_bounds = array<i64: 1, 32>}, {pipeline_mode = #tpu.pipeline_mode<synchronous>, transform_indices = @transform_2, window_bounds = array<i64: 1, 32>}, {transform_indices = @transform_3, window_bounds = array<i64: 32, 64>}, {transform_indices = @transform_4, window_bounds = array<i64: 1, 64>}, {transform_indices = @transform_5, window_bounds = array<i64: 64, 32>}, {pipeline_mode = #tpu.pipeline_mode<synchronous>, transform_indices = @transform_6, window_bounds = array<i64: 1, 32>}, {transform_indices = @transform_7, window_bounds = array<i64: 16, 32>}]} {
    %c0_i32 = arith.constant 0 : i32
    %0 = arith.cmpi eq, %arg1, %c0_i32 : i32
    %1 = arith.extui %0 : i1 to i32
    %c0_i32_0 = arith.constant 0 : i32
    %2 = arith.cmpi ne, %1, %c0_i32_0 : i32
    scf.if %2 {
      %c0_16 = arith.constant 0 : index
      %c0_17 = arith.constant 0 : index
      %19 = vector.load %arg2[%c0_16, %c0_17] : memref<16x32xf32, #tpu.memory_space<vmem>>, vector<16x32xf32>
      %c0_18 = arith.constant 0 : index
      %c0_19 = arith.constant 0 : index
      %20 = vector.load %arg3[%c0_18, %c0_19] : memref<1x32xf32, #tpu.memory_space<vmem>>, vector<1x32xf32>
      %c0_20 = arith.constant 0 : index
      %c0_21 = arith.constant 0 : index
      %21 = vector.load %arg4[%c0_20, %c0_21] : memref<1x32xf32, #tpu.memory_space<vmem>>, vector<1x32xf32>
      %cst_22 = arith.constant dense<0.000000e+00> : vector<16xf32>
      %22 = vector.multi_reduction <add>, %19, %cst_22 [1] : vector<16x32xf32> to vector<16xf32>
      %23 = vector.shape_cast %22 : vector<16xf32> to vector<16x1xf32>
      %cst_23 = arith.constant 3.200000e+01 : f32
      %24 = vector.broadcast %cst_23 : f32 to vector<16x1xf32>
      %25 = arith.divf %23, %24 : vector<16x1xf32>
      %26 = vector.broadcast %25 : vector<16x1xf32> to vector<16x32xf32>
      %27 = arith.subf %19, %26 : vector<16x32xf32>
      %28 = arith.mulf %27, %27 : vector<16x32xf32>
      %cst_24 = arith.constant dense<0.000000e+00> : vector<16xf32>
      %29 = vector.multi_reduction <add>, %28, %cst_24 [1] : vector<16x32xf32> to vector<16xf32>
      %30 = vector.shape_cast %29 : vector<16xf32> to vector<16x1xf32>
      %cst_25 = arith.constant 0.0322580636 : f32
      %31 = vector.broadcast %cst_25 : f32 to vector<16x1xf32>
      %32 = arith.mulf %30, %31 : vector<16x1xf32>
      %33 = math.sqrt %32 : vector<16x1xf32>
      %cst_26 = arith.constant 9.99999997E-7 : f32
      %34 = vector.broadcast %cst_26 : f32 to vector<16x1xf32>
      %35 = arith.addf %33, %34 : vector<16x1xf32>
      %36 = tpu.reciprocal %35 : vector<16x1xf32> -> vector<16x1xf32>
      %37 = vector.broadcast %36 : vector<16x1xf32> to vector<16x32xf32>
      %38 = arith.mulf %27, %37 : vector<16x32xf32>
      %39 = vector.broadcast %20 : vector<1x32xf32> to vector<16x32xf32>
      %40 = arith.mulf %39, %38 : vector<16x32xf32>
      %41 = vector.broadcast %21 : vector<1x32xf32> to vector<16x32xf32>
      %42 = arith.addf %40, %41 : vector<16x32xf32>
      %c0_27 = arith.constant 0 : index
      %c0_28 = arith.constant 0 : index
      %43 = vector.load %arg10[%c0_27, %c0_28] : memref<16x32xf32, #tpu.memory_space<vmem>>, vector<16x32xf32>
      tpu.vector_store %arg10[%c0_27, %c0_28], %42 {strides = array<i32>} : memref<16x32xf32, #tpu.memory_space<vmem>>, vector<16x32xf32>,
      %cst_29 = arith.constant 0.000000e+00 : f32
      %44 = vector.broadcast %cst_29 : f32 to vector<16x32xf32>
      %c0_30 = arith.constant 0 : index
      %c0_31 = arith.constant 0 : index
      %45 = vector.load %arg11[%c0_30, %c0_31] : memref<16x32xf32, #tpu.memory_space<vmem>>, vector<16x32xf32>
      tpu.vector_store %arg11[%c0_30, %c0_31], %44 {strides = array<i32>} : memref<16x32xf32, #tpu.memory_space<vmem>>, vector<16x32xf32>,
    } else {
    }
    %c0 = arith.constant 0 : index
    %c0_1 = arith.constant 0 : index
    %3 = vector.load %arg10[%c0, %c0_1] : memref<16x32xf32, #tpu.memory_space<vmem>>, vector<16x32xf32>
    %c0_2 = arith.constant 0 : index
    %c0_3 = arith.constant 0 : index
    %4 = vector.load %arg5[%c0_2, %c0_3] : memref<32x64xf32, #tpu.memory_space<vmem>>, vector<32x64xf32>
    %cst = arith.constant dense<0.000000e+00> : vector<16x64xf32>
    %5 = tpu.matmul %3, %4, %cst {dimension_numbers = #tpu.dot_dimension_numbers<[1], [0], [0], [1], [0, 0, 1, 1], [], []>} : vector<16x32xf32>, vector<32x64xf32>, vector<16x64xf32> -> vector<16x64xf32>
    %c0_4 = arith.constant 0 : index
    %c0_5 = arith.constant 0 : index
    %6 = vector.load %arg6[%c0_4, %c0_5] : memref<1x64xf32, #tpu.memory_space<vmem>>, vector<1x64xf32>
    %7 = vector.broadcast %6 : vector<1x64xf32> to vector<16x64xf32>
    %8 = arith.addf %5, %7 : vector<16x64xf32>
    %cst_6 = arith.constant 0.000000e+00 : f32
    %9 = vector.broadcast %cst_6 : f32 to vector<16x64xf32>
    %10 = arith.maximumf %8, %9 : vector<16x64xf32>
    %c0_7 = arith.constant 0 : index
    %c0_8 = arith.constant 0 : index
    %11 = vector.load %arg11[%c0_7, %c0_8] : memref<16x32xf32, #tpu.memory_space<vmem>>, vector<16x32xf32>
    %c0_9 = arith.constant 0 : index
    %c0_10 = arith.constant 0 : index
    %12 = vector.load %arg7[%c0_9, %c0_10] : memref<64x32xf32, #tpu.memory_space<vmem>>, vector<64x32xf32>
    %cst_11 = arith.constant dense<0.000000e+00> : vector<16x32xf32>
    %13 = tpu.matmul %10, %12, %cst_11 {dimension_numbers = #tpu.dot_dimension_numbers<[1], [0], [0], [1], [0, 0, 1, 1], [], []>} : vector<16x64xf32>, vector<64x32xf32>, vector<16x32xf32> -> vector<16x32xf32>
    %14 = arith.addf %11, %13 : vector<16x32xf32>
    %c0_12 = arith.constant 0 : index
    %c0_13 = arith.constant 0 : index
    %15 = vector.load %arg11[%c0_12, %c0_13] : memref<16x32xf32, #tpu.memory_space<vmem>>, vector<16x32xf32>
    tpu.vector_store %arg11[%c0_12, %c0_13], %14 {strides = array<i32>} : memref<16x32xf32, #tpu.memory_space<vmem>>, vector<16x32xf32>,
    %c0_i32_14 = arith.constant 0 : i32
    %16 = arith.cmpi eq, %arg1, %c0_i32_14 : i32
    %17 = arith.extui %16 : i1 to i32
    %c0_i32_15 = arith.constant 0 : i32
    %18 = arith.cmpi ne, %17, %c0_i32_15 : i32
    scf.if %18 {
      %c0_16 = arith.constant 0 : index
      %c0_17 = arith.constant 0 : index
      %19 = vector.load %arg2[%c0_16, %c0_17] : memref<16x32xf32, #tpu.memory_space<vmem>>, vector<16x32xf32>
      %c0_18 = arith.constant 0 : index
      %c0_19 = arith.constant 0 : index
      %20 = vector.load %arg11[%c0_18, %c0_19] : memref<16x32xf32, #tpu.memory_space<vmem>>, vector<16x32xf32>
      %21 = arith.addf %19, %20 : vector<16x32xf32>
      %c0_20 = arith.constant 0 : index
      %c0_21 = arith.constant 0 : index
      %22 = vector.load %arg8[%c0_20, %c0_21] : memref<1x32xf32, #tpu.memory_space<vmem>>, vector<1x32xf32>
      %23 = vector.broadcast %22 : vector<1x32xf32> to vector<16x32xf32>
      %24 = arith.addf %21, %23 : vector<16x32xf32>
      %c0_22 = arith.constant 0 : index
      %c0_23 = arith.constant 0 : index
      %25 = vector.load %arg9[%c0_22, %c0_23] : memref<16x32xf32, #tpu.memory_space<vmem>>, vector<16x32xf32>
      tpu.vector_store %arg9[%c0_22, %c0_23], %24 {strides = array<i32>} : memref<16x32xf32, #tpu.memory_space<vmem>>, vector<16x32xf32>,
    } else {
    }
    return
  }
  func.func @transform_0(%arg0: i32, %arg1: i32) -> (i32, i32) {
    %c0_i32 = arith.constant 0 : i32
    %c0_i32_0 = arith.constant 0 : i32
    return %arg0, %c0_i32 : i32, i32
  }
  func.func @transform_1(%arg0: i32, %arg1: i32) -> (i32, i32) {
    %c0_i32 = arith.constant 0 : i32
    %c0_i32_0 = arith.constant 0 : i32
    %c0_i32_1 = arith.constant 0 : i32
    return %c0_i32, %c0_i32_0 : i32, i32
  }
  func.func @transform_2(%arg0: i32, %arg1: i32) -> (i32, i32) {
    %c0_i32 = arith.constant 0 : i32
    %c0_i32_0 = arith.constant 0 : i32
    %c0_i32_1 = arith.constant 0 : i32
    return %c0_i32, %c0_i32_0 : i32, i32
  }
  func.func @transform_3(%arg0: i32, %arg1: i32) -> (i32, i32) {
    %c0_i32 = arith.constant 0 : i32
    %c0_i32_0 = arith.constant 0 : i32
    return %c0_i32, %arg1 : i32, i32
  }
  func.func @transform_4(%arg0: i32, %arg1: i32) -> (i32, i32) {
    %c0_i32 = arith.constant 0 : i32
    %c0_i32_0 = arith.constant 0 : i32
    return %c0_i32, %arg1 : i32, i32
  }
  func.func @transform_5(%arg0: i32, %arg1: i32) -> (i32, i32) {
    %c0_i32 = arith.constant 0 : i32
    %c0_i32_0 = arith.constant 0 : i32
    return %arg1, %c0_i32 : i32, i32
  }
  func.func @transform_6(%arg0: i32, %arg1: i32) -> (i32, i32) {
    %c0_i32 = arith.constant 0 : i32
    %c0_i32_0 = arith.constant 0 : i32
    %c0_i32_1 = arith.constant 0 : i32
    return %c0_i32, %c0_i32_0 : i32, i32
  }
  func.func @transform_7(%arg0: i32, %arg1: i32) -> (i32, i32) {
    %c0_i32 = arith.constant 0 : i32
    %c0_i32_0 = arith.constant 0 : i32
    return %arg0, %c0_i32 : i32, i32
  }
}

</mosaic_0001>

<llo_original>
// kernel: decoder_layer.5
$region0: #{decoder_layer.5}
  #allocation0 [shape = 'u32[]', space=smem, size = 0x4, offset = 0x4, fixed_abs, tag = 'smem constant byte address 0x4 - core index']
  #allocation1 [shape = 'u32[72,128]{1,0:T(1,128)}', space=vmem, size = 0x9000, scoped, tag = 'internal scratch']
  #allocation2 [shape = 'f32[16,32]{1,0:T(8,128)}', space=vmem, size = 0x2000, scoped, tag = 'scratch operand']
  #allocation3 [shape = 'f32[16,32]{1,0:T(8,128)}', space=vmem, size = 0x2000, scoped, tag = 'scratch operand']
  %s0 = inlined_call_operand.vmem [shape: f32[16,32], index: 0, kind: input, shape index: {}]
  %s1 = inlined_call_operand.vmem [shape: f32[1,32], index: 1, kind: input, shape index: {}]
  %s2 = inlined_call_operand.vmem [shape: f32[1,32], index: 2, kind: input, shape index: {}]
  %s3 = inlined_call_operand.vmem [shape: f32[32,64], index: 3, kind: input, shape index: {}]
  %s4 = inlined_call_operand.vmem [shape: f32[1,64], index: 4, kind: input, shape index: {}]
  %s5 = inlined_call_operand.vmem [shape: f32[64,32], index: 5, kind: input, shape index: {}]
  %s6 = inlined_call_operand.vmem [shape: f32[1,32], index: 6, kind: input, shape index: {}]
  %s7 = inlined_call_operand.hbm [shape: f32[16,32], index: 7, kind: output, shape index: {}]
  %s8 = sld [smem:[#allocation0]]
  $region46: #{decoder_layer.5} parent=0
    _
  %s10 = ssub.s32 1, %s8
  %s11 = scalar_select 0, %s10, %s8
  $region1: #{decoder_layer.5} parent=0
    #allocation4 [shape = 'u8[8192]{0}', space=vmem, size = 0x2000, scoped, tag = 'output window, operand 0, single buffered']
    #allocation5 [shape = 's32[1]{0}', space=sflag, size = 0x4, scoped, tag = 'scoped memory for decoder_layer.5']
    %12 = vsyncpa [#allocation5], 0
    // Predicated region
    $region2: #{decoder_layer.5} parent=1 // pred_check
      _
    $region3: #{decoder_layer.5} parent=1 // pred_check_branch
      %14 = sbr.rel (0) target = $region5
    $region4: #{decoder_layer.5} parent=1 // pred_region
      _
    $region5: #{decoder_layer.5} parent=1 // pred_fallthru
      _
    // Predicated region
    $region6: #{decoder_layer.5} parent=1 // pred_check
      _
    $region7: #{decoder_layer.5} parent=1 // pred_check_branch
      %16 = sbr.rel (0) target = $region9
    $region8: #{decoder_layer.5} parent=1 // pred_region
      _
    $region9: #{decoder_layer.5} parent=1 // pred_fallthru
      _
    // Predicated region
    $region10: #{decoder_layer.5} parent=1 // pred_check
      _
    $region11: #{decoder_layer.5} parent=1 // pred_check_branch
      %18 = sbr.rel (0) target = $region13
    $region12: #{decoder_layer.5} parent=1 // pred_region
      _
    $region13: #{decoder_layer.5} parent=1 // pred_fallthru
      _
    // Predicated region
    $region14: #{decoder_layer.5} parent=1 // pred_check
      _
    $region15: #{decoder_layer.5} parent=1 // pred_check_branch
      %20 = sbr.rel (0) target = $region17
    $region16: #{decoder_layer.5} parent=1 // pred_region
      _
    $region17: #{decoder_layer.5} parent=1 // pred_fallthru
      _
    // Predicated region
    $region18: #{decoder_layer.5} parent=1 // pred_check
      _
    $region19: #{decoder_layer.5} parent=1 // pred_check_branch
      %22 = sbr.rel (0) target = $region21
    $region20: #{decoder_layer.5} parent=1 // pred_region
      _
    $region21: #{decoder_layer.5} parent=1 // pred_fallthru
      _
    // Predicated region
    $region22: #{decoder_layer.5} parent=1 // pred_check
      _
    $region23: #{decoder_layer.5} parent=1 // pred_check_branch
      %24 = sbr.rel (0) target = $region25
    $region24: #{decoder_layer.5} parent=1 // pred_region
      _
    $region25: #{decoder_layer.5} parent=1 // pred_fallthru
      _
    // Predicated region
    $region26: #{decoder_layer.5} parent=1 // pred_check
      _
    $region27: #{decoder_layer.5} parent=1 // pred_check_branch
      %26 = sbr.rel (0) target = $region29
    $region28: #{decoder_layer.5} parent=1 // pred_region
      _
    $region29: #{decoder_layer.5} parent=1 // pred_fallthru
      _
    %p27 = scmp.eq.s32.totalorder 0, 0
    // Predicated region
    $region30: #{decoder_layer.5} parent=1 // pred_check
      %p28 = pneg %p27
    $region31: #{decoder_layer.5} parent=1 // pred_check_branch
      %30 = sbr.rel (%p28) target = $region33
    $region32: #{decoder_layer.5} parent=1 // pred_region
      %v31 = vld [vmem:[%s0] sm:$0xff]
      %v32 = vld [vmem:[%s0 + $0x8] sm:$0xff]
      %v33 = vld [vmem:[%s1] sm:$0x1]
      %v34 = vld [vmem:[%s2] sm:$0x1]
      %vm35 = vcmask 261120
      %v36 = vsel %vm35, %v31, 0.0
      %37 = vadd.xlane.f32.xlu0 %v36
      %v38 = vpop.xlane.xlu0 %37
      %v39 = vsel %vm35, %v32, 0.0
      %40 = vadd.xlane.f32.xlu0 %v39
      %v41 = vpop.xlane.xlu0 %40
      %v42 = vrcp.pop 32.0
      %v43 = vmul.f32 32.0, %v42
      %v44 = vsub.f32 1.0, %v43
      %v45 = vmul.f32 %v42, %v44
      %v46 = vadd.f32 %v42, %v45
      %vm47 = vweird.f32 %v42
      %v48 = vsel %vm47, %v42, %v46
      %v49 = vmul.f32 %v38, %v48
      %v50 = vmul.f32 %v41, %v48
      %v51 = vsub.f32 %v31, %v49
      %v52 = vsub.f32 %v32, %v50
      %v53 = vmul.f32 %v51, %v51
      %v54 = vmul.f32 %v52, %v52
      %v55 = vsel %vm35, %v53, 0.0
      %56 = vadd.xlane.f32.xlu0 %v55
      %v57 = vpop.xlane.xlu0 %56
      %v58 = vsel %vm35, %v54, 0.0
      %59 = vadd.xlane.f32.xlu0 %v58
      %v60 = vpop.xlane.xlu0 %59
      %v61 = vmul.f32 %v57, 0.032258064
      %v62 = vmul.f32 %v60, 0.032258064
      %v63 = vrsqrt.pop %v61
      %v64 = vmul.f32 %v63, %v61
      %v65 = vmul.f32 %v64, %v63
      %v66 = vmul.f32 0.5, %v65
      %v67 = vsub.f32 1.5, %v66
      %v68 = vmul.f32 %v63, %v67
      %v69 = vmul.f32 %v61, %v68
      %vm70 = vcmp.eq.f32.partialorder %v61, inf
      %v71 = vsel %vm70, %v61, %v69
      %vm72 = vcmp.eq.f32.partialorder %v61, 0.0
      %v73 = vand.u32 %v61, 2147483648
      %v74 = vsel %vm72, %v73, %v71
      %v75 = vrsqrt.pop %v62
      %v76 = vmul.f32 %v75, %v62
      %v77 = vmul.f32 %v76, %v75
      %v78 = vmul.f32 0.5, %v77
      %v79 = vsub.f32 1.5, %v78
      %v80 = vmul.f32 %v75, %v79
      %v81 = vmul.f32 %v62, %v80
      %vm82 = vcmp.eq.f32.partialorder %v62, inf
      %v83 = vsel %vm82, %v62, %v81
      %vm84 = vcmp.eq.f32.partialorder %v62, 0.0
      %v85 = vand.u32 %v62, 2147483648
      %v86 = vsel %vm84, %v85, %v83
      %v87 = vadd.f32 %v74, 1e-06
      %v88 = vadd.f32 %v86, 1e-06
      %v89 = vrcp.pop %v87
      %v90 = vmul.f32 %v87, %v89
      %v91 = vsub.f32 1.0, %v90
      %v92 = vmul.f32 %v89, %v91
      %v93 = vadd.f32 %v89, %v92
      %vm94 = vweird.f32 %v87
      %vm95 = vweird.f32 %v89
      %vm96 = vmor %vm94, %vm95
      %v97 = vsel %vm96, %v89, %v93
      %v98 = vand.u32 2147483647, %v87
      %vm99 = vcmp.eq.f32.partialorder %v98, 8.507059e+37
      %v100 = vand.u32 %v87, 2147483648
      %v101 = vor.u32 1.1754944e-38, %v100
      %v102 = vsel %vm99, %v101, %v97
      %v103 = vrcp.pop %v88
      %v104 = vmul.f32 %v88, %v103
      %v105 = vsub.f32 1.0, %v104
      %v106 = vmul.f32 %v103, %v105
      %v107 = vadd.f32 %v103, %v106
      %vm108 = vweird.f32 %v88
      %vm109 = vweird.f32 %v103
      %vm110 = vmor %vm108, %vm109
      %v111 = vsel %vm110, %v103, %v107
      %v112 = vand.u32 2147483647, %v88
      %vm113 = vcmp.eq.f32.partialorder %v112, 8.507059e+37
      %v114 = vand.u32 %v88, 2147483648
      %v115 = vor.u32 1.1754944e-38, %v114
      %v116 = vsel %vm113, %v115, %v111
      %v117 = vmul.f32 %v51, %v102
      %v118 = vmul.f32 %v52, %v116
      %v120 = vperm.slane %v33, 0
      %v122 = vmul.f32 %v120, %v117
      %v123 = vmul.f32 %v120, %v118
      %v125 = vperm.slane %v34, 0
      %v127 = vadd.f32 %v122, %v125
      %v128 = vadd.f32 %v123, %v125
      %129 = vst.msk [vmem:[#allocation2] sm:$0xff] %vm35, %v127
      %130 = vst.msk [vmem:[#allocation2 + $0x8] sm:$0xff] %vm35, %v128
      %131 = vst.msk [vmem:[#allocation3] sm:$0xff] %vm35, 0.0
      %132 = vst.msk [vmem:[#allocation3 + $0x8] sm:$0xff] %vm35, 0.0
    $region33: #{decoder_layer.5} parent=1 // pred_fallthru
      _
    %v133 = vld [vmem:[#allocation2] sm:$0xff]
    %v134 = vld [vmem:[#allocation2 + $0x8] sm:$0xff]
    %v135 = vld [vmem:[%s3] sm:$0xff]
    %v136 = vld [vmem:[%s3 + $0x8] sm:$0xff]
    %v137 = vld [vmem:[%s3 + $0x10] sm:$0xff]
    %v138 = vld [vmem:[%s3 + $0x18] sm:$0xff]
    %v139 = vld [vmem:[%s4] sm:$0x1]
    %v141 = vperm.slane %v139, 0
    %vm143 = vcmask 261120
    %v145 = vsel %vm143, %v133, 0
    %v148 = vsel %vm143, %v134, 0
    %150 = vmatpush.msra.mxu0 0.0
    %151 = vmatpush.msra.mxu0 0.0
    %152 = vmatpush.msra.mxu0 0.0
    %153 = vmatpush.msra.mxu0 0.0
    %154 = vmatpush.msra.mxu0 0.0
    %155 = vmatpush.msra.mxu0 0.0
    %156 = vmatpush.msra.mxu0 0.0
    %157 = vmatpush.msra.mxu0 0.0
    %158 = vmatpush.msra.mxu0 0.0
    %159 = vmatpush.msra.mxu0 0.0
    %160 = vmatpush.msra.mxu0 0.0
    %161 = vmatpush.msra.mxu0 0.0
    %162 = vmatpush.msra.mxu0 %v138
    %163 = vmatpush.msra.mxu0 %v137
    %164 = vmatpush.msra.mxu0 %v136
    %165 = vmatpush.msra.mxu0 %v135
    %166 = vmatmul.f32.gmra.mxu0 %v145
    %v167 = vpop.f32.mrf.mxu0
    %v168 = vadd.f32 %v141, %v167
    %169 = vmatmul.f32.gmra.mxu0 %v148
    %v170 = vpop.f32.mrf.mxu0
    %v171 = vadd.f32 %v141, %v170
    %172 = vdwg.mxu0
    %v173 = vmax.f32 %v168, 0.0
    %v174 = vmax.f32 %v171, 0.0
    %v175 = vld [vmem:[#allocation3] sm:$0xff]
    %v176 = vld [vmem:[#allocation3 + $0x8] sm:$0xff]
    %v177 = vld [vmem:[%s5] sm:$0xff]
    %v178 = vld [vmem:[%s5 + $0x8] sm:$0xff]
    %v179 = vld [vmem:[%s5 + $0x10] sm:$0xff]
    %v180 = vld [vmem:[%s5 + $0x18] sm:$0xff]
    %v181 = vld [vmem:[%s5 + $0x20] sm:$0xff]
    %v182 = vld [vmem:[%s5 + $0x28] sm:$0xff]
    %v183 = vld [vmem:[%s5 + $0x30] sm:$0xff]
    %v184 = vld [vmem:[%s5 + $0x38] sm:$0xff]
    %vm185 = vcmask 523264
    %v187 = vsel %vm185, %v173, 0
    %v190 = vsel %vm185, %v174, 0
    %192 = vmatpush.msra.mxu0 0.0
    %193 = vmatpush.msra.mxu0 0.0
    %194 = vmatpush.msra.mxu0 0.0
    %195 = vmatpush.msra.mxu0 0.0
    %196 = vmatpush.msra.mxu0 0.0
    %197 = vmatpush.msra.mxu0 0.0
    %198 = vmatpush.msra.mxu0 0.0
    %199 = vmatpush.msra.mxu0 0.0
    %200 = vmatpush.msra.mxu0 %v184
    %201 = vmatpush.msra.mxu0 %v183
    %202 = vmatpush.msra.mxu0 %v182
    %203 = vmatpush.msra.mxu0 %v181
    %204 = vmatpush.msra.mxu0 %v180
    %205 = vmatpush.msra.mxu0 %v179
    %206 = vmatpush.msra.mxu0 %v178
    %207 = vmatpush.msra.mxu0 %v177
    %208 = vmatmul.f32.gmra.mxu0 %v187
    %v209 = vpop.f32.mrf.mxu0
    %v210 = vadd.f32 0.0, %v209
    %211 = vmatmul.f32.gmra.mxu0 %v190
    %v212 = vpop.f32.mrf.mxu0
    %v213 = vadd.f32 0.0, %v212
    %214 = vdwg.mxu0
    %v215 = vadd.f32 %v175, %v210
    %v216 = vadd.f32 %v176, %v213
    %217 = vst.msk [vmem:[#allocation3] sm:$0xff] %vm143, %v215
    %218 = vst.msk [vmem:[#allocation3 + $0x8] sm:$0xff] %vm143, %v216
    // Predicated region
    $region34: #{decoder_layer.5} parent=1 // pred_check
      %p219 = pneg %p27
    $region35: #{decoder_layer.5} parent=1 // pred_check_branch
      %221 = sbr.rel (%p219) target = $region37
    $region36: #{decoder_layer.5} parent=1 // pred_region
      %v222 = vld [vmem:[%s0] sm:$0xff]
      %v223 = vld [vmem:[%s0 + $0x8] sm:$0xff]
      %v224 = vld [vmem:[#allocation3] sm:$0xff]
      %v225 = vld [vmem:[#allocation3 + $0x8] sm:$0xff]
      %v226 = vadd.f32 %v222, %v224
      %v227 = vadd.f32 %v223, %v225
      %v228 = vld [vmem:[%s6] sm:$0x1]
      %v230 = vperm.slane %v228, 0
      %v232 = vadd.f32 %v226, %v230
      %v233 = vadd.f32 %v227, %v230
      %234 = vst.msk [vmem:[#allocation4] sm:$0xff] %vm143, %v232
      %235 = vst.msk [vmem:[#allocation4 + $0x8] sm:$0xff] %vm143, %v233
    $region37: #{decoder_layer.5} parent=1 // pred_fallthru
      _
    // Predicated region
    $region38: #{decoder_layer.5} parent=1 // pred_check
      _
    $region39: #{decoder_layer.5} parent=1 // pred_check_branch
      %237 = sbr.rel (0) target = $region41
    $region40: #{decoder_layer.5} parent=1 // pred_region
      %239 = vsyncadd [#allocation5], 0
      %s240 = sshll.u32 [#allocation4], 4
      %s241 = int_to_ptr.vmem [resolvable:$true] %s240
      %s242 = sshll.u32 %s7, 4
      %s243 = int_to_ptr.hbm [resolvable:$true] %s242
      %248 = dma.vmem_to_hbm [thread:$0]  %s241, 256, %s243, [#allocation5], 128, 128, 8
    $region41: #{decoder_layer.5} parent=1 // pred_fallthru
      _
    // Predicated region
    $region42: #{decoder_layer.5} parent=1 // pred_check
      _
    $region43: #{decoder_layer.5} parent=1 // pred_check_branch
      %250 = sbr.rel (0) target = $region45
    $region44: #{decoder_layer.5} parent=1 // pred_region
      %252 = dma.done [#allocation5], 256
    $region45: #{decoder_layer.5} parent=1 // pred_fallthru
      _
    %253 = vsyncpa [#allocation5], 1

// kernel: decoder_layer.3
$region0: #{decoder_layer.3}
  #allocation0 [shape = 'u32[]', space=smem, size = 0x4, offset = 0x4, fixed_abs, tag = 'smem constant byte address 0x4 - core index']
  #allocation1 [shape = 'u32[72,128]{1,0:T(1,128)}', space=vmem, size = 0x9000, scoped, tag = 'internal scratch']
  %s0 = inlined_call_operand.vmem [shape: f32[2,8,32], index: 0, kind: input, shape index: {}]
  %s1 = inlined_call_operand.vmem [shape: f32[1,32], index: 1, kind: input, shape index: {}]
  %s2 = inlined_call_operand.vmem [shape: f32[1,32], index: 2, kind: input, shape index: {}]
  %s3 = inlined_call_operand.hbm [shape: f32[32,96], index: 3, kind: input, shape index: {}]
  %s4 = inlined_call_operand.vmem [shape: f32[1,96], index: 4, kind: input, shape index: {}]
  %s5 = inlined_call_operand.hbm [shape: f32[32,32], index: 5, kind: input, shape index: {}]
  %s6 = inlined_call_operand.vmem [shape: f32[1,32], index: 6, kind: input, shape index: {}]
  %s7 = inlined_call_operand.vmem [shape: f32[2,8,32], index: 7, kind: output, shape index: {}]
  %s8 = sld [smem:[#allocation0]]
  $region69: #{decoder_layer.3} parent=0
    _
  %s10 = ssub.s32 1, %s8
  %s11 = scalar_select 0, %s10, %s8
  $region1: #{decoder_layer.3} parent=0
    #allocation2 [shape = 'u8[16384]{0}', space=vmem, size = 0x4000, scoped, tag = 'input window, operand 3, single buffered']
    #allocation3 [shape = 's32[2]{0}', space=sflag, size = 0x8, scoped, tag = 'scoped memory for decoder_layer.3']
    #allocation4 [shape = 'u8[16384]{0}', space=vmem, size = 0x4000, scoped, tag = 'input window, operand 5, single buffered']
    #allocation5 [shape = 's32[1]{0}', space=sflag, size = 0x4, scoped, tag = 'scoped memory for decoder_layer.3']
    %12 = vsyncpa [#allocation3], 0
    %13 = vsyncpa [#allocation5], 0
    loop: start=0, step=1, limit=4
    $region2: #{decoder_layer.3} parent=1 // loop_pre_header
      _
    $region3: #{decoder_layer.3} parent=1 // loop_header
      %s15 = sphi 0, %s19
      %p16 = scmp.ge.s32.totalorder %s15, 4
      %s25 = sphi 0, %s27
      %s28 = sphi 0, %s25
      %s29 = sphi 0, %s28
      %s45 = sphi 0, %s29
      %s49 = sphi 0, %s49
      %s51 = sphi 0, %s49
      %s52 = sphi 0, %s51
      %s66 = sphi 0, %s52
      %s70 = sphi 0, %s70
      %s72 = sphi 0, %s70
      %s73 = sphi 0, %s72
      %s87 = sphi 0, %s73
      %s91 = sphi 0, %s91
      %s93 = sphi 0, %s91
      %s94 = sphi 0, %s93
      %s108 = sphi 0, %s94
      %s112 = sphi 0, %s112
      %s114 = sphi 0, %s112
      %s115 = sphi 0, %s114
      %s129 = sphi 0, %s115
      %s133 = sphi 0, %s133
      %s135 = sphi 0, %s133
      %s136 = sphi 0, %s135
      %s150 = sphi 0, %s136
      %s154 = sphi 0, %s154
      %s156 = sphi 0, %s154
      %s157 = sphi 0, %s156
      %s171 = sphi 0, %s157
      %s177 = sphi 0, %s179
      %s180 = sphi 0, %s177
      %s181 = sphi 0, %s180
      %s197 = sphi 0, %s181
    $region4: #{decoder_layer.3} parent=1 // loop_header_branch
      %18 = sbr.rel (%p16) target = $region8
    $region5: #{decoder_layer.3} parent=1 // loop_body
      %s20 = ssub.s32 %s15, 1
      %s21 = ssub.s32 %s15, 2
      %s22 = sadd.s32 %s15, 1
      %s23 = ssub.s32 %s15, %s22
      %p24 = scmp.eq.s32.totalorder %s23, 0
      %s26 = sadd.s32 %s25, 1
      %s27 = scalar_select %p24, %s25, %s26
      %p30 = pneg %p24
      %p31 = scmp.eq.s32.totalorder %s15, 1
      %p32 = por %p30, %p31
      %p33 = scmp.ne.s32.totalorder %s25, %s28
      %p34 = scmp.eq.s32.totalorder %s15, 0
      %p35 = por %p33, %p34
      %p36 = scmp.ne.s32.totalorder %s25, %s28
      %p37 = scmp.eq.s32.totalorder %s20, 1
      %p38 = por %p36, %p37
      %p39 = scmp.ne.s32.totalorder %s28, %s29
      %p40 = scmp.eq.s32.totalorder %s20, 0
      %p41 = por %p39, %p40
      %p42 = scmp.ne.s32.totalorder %s28, %s29
      %p43 = scmp.eq.s32.totalorder %s21, 1
      %p44 = por %p42, %p43
      %p46 = scmp.ne.s32.totalorder %s29, %s45
      %p47 = scmp.eq.s32.totalorder %s21, 0
      %p48 = por %p46, %p47
      %s50 = sadd.s32 %s49, 1
      %p53 = scmp.eq.s32.totalorder %s15, 1
      %p54 = scmp.ne.s32.totalorder %s49, %s51
      %p55 = scmp.eq.s32.totalorder %s15, 0
      %p56 = por %p54, %p55
      %p57 = scmp.ne.s32.totalorder %s49, %s51
      %p58 = scmp.eq.s32.totalorder %s20, 1
      %p59 = por %p57, %p58
      %p60 = scmp.ne.s32.totalorder %s51, %s52
      %p61 = scmp.eq.s32.totalorder %s20, 0
      %p62 = por %p60, %p61
      %p63 = scmp.ne.s32.totalorder %s51, %s52
      %p64 = scmp.eq.s32.totalorder %s21, 1
      %p65 = por %p63, %p64
      %p67 = scmp.ne.s32.totalorder %s52, %s66
      %p68 = scmp.eq.s32.totalorder %s21, 0
      %p69 = por %p67, %p68
      %s71 = sadd.s32 %s70, 1
      %p74 = scmp.eq.s32.totalorder %s15, 1
      %p75 = scmp.ne.s32.totalorder %s70, %s72
      %p76 = scmp.eq.s32.totalorder %s15, 0
      %p77 = por %p75, %p76
      %p78 = scmp.ne.s32.totalorder %s70, %s72
      %p79 = scmp.eq.s32.totalorder %s20, 1
      %p80 = por %p78, %p79
      %p81 = scmp.ne.s32.totalorder %s72, %s73
      %p82 = scmp.eq.s32.totalorder %s20, 0
      %p83 = por %p81, %p82
      %p84 = scmp.ne.s32.totalorder %s72, %s73
      %p85 = scmp.eq.s32.totalorder %s21, 1
      %p86 = por %p84, %p85
      %p88 = scmp.ne.s32.totalorder %s73, %s87
      %p89 = scmp.eq.s32.totalorder %s21, 0
      %p90 = por %p88, %p89
      %s92 = sadd.s32 %s91, 1
      %p95 = scmp.eq.s32.totalorder %s15, 1
      %p96 = scmp.ne.s32.totalorder %s91, %s93
      %p97 = scmp.eq.s32.totalorder %s15, 0
      %p98 = por %p96, %p97
      %p99 = scmp.ne.s32.totalorder %s91, %s93
      %p100 = scmp.eq.s32.totalorder %s20, 1
      %p101 = por %p99, %p100
      %p102 = scmp.ne.s32.totalorder %s93, %s94
      %p103 = scmp.eq.s32.totalorder %s20, 0
      %p104 = por %p102, %p103
      %p105 = scmp.ne.s32.totalorder %s93, %s94
      %p106 = scmp.eq.s32.totalorder %s21, 1
      %p107 = por %p105, %p106
      %p109 = scmp.ne.s32.totalorder %s94, %s108
      %p110 = scmp.eq.s32.totalorder %s21, 0
      %p111 = por %p109, %p110
      %s113 = sadd.s32 %s112, 1
      %p116 = scmp.eq.s32.totalorder %s15, 1
      %p117 = scmp.ne.s32.totalorder %s112, %s114
      %p118 = scmp.eq.s32.totalorder %s15, 0
      %p119 = por %p117, %p118
      %p120 = scmp.ne.s32.totalorder %s112, %s114
      %p121 = scmp.eq.s32.totalorder %s20, 1
      %p122 = por %p120, %p121
      %p123 = scmp.ne.s32.totalorder %s114, %s115
      %p124 = scmp.eq.s32.totalorder %s20, 0
      %p125 = por %p123, %p124
      %p126 = scmp.ne.s32.totalorder %s114, %s115
      %p127 = scmp.eq.s32.totalorder %s21, 1
      %p128 = por %p126, %p127
      %p130 = scmp.ne.s32.totalorder %s115, %s129
      %p131 = scmp.eq.s32.totalorder %s21, 0
      %p132 = por %p130, %p131
      %s134 = sadd.s32 %s133, 1
      %p137 = scmp.eq.s32.totalorder %s15, 1
      %p138 = scmp.ne.s32.totalorder %s133, %s135
      %p139 = scmp.eq.s32.totalorder %s15, 0
      %p140 = por %p138, %p139
      %p141 = scmp.ne.s32.totalorder %s133, %s135
      %p142 = scmp.eq.s32.totalorder %s20, 1
      %p143 = por %p141, %p142
      %p144 = scmp.ne.s32.totalorder %s135, %s136
      %p145 = scmp.eq.s32.totalorder %s20, 0
      %p146 = por %p144, %p145
      %p147 = scmp.ne.s32.totalorder %s135, %s136
      %p148 = scmp.eq.s32.totalorder %s21, 1
      %p149 = por %p147, %p148
      %p151 = scmp.ne.s32.totalorder %s136, %s150
      %p152 = scmp.eq.s32.totalorder %s21, 0
      %p153 = por %p151, %p152
      %s155 = sadd.s32 %s154, 1
      %p158 = scmp.eq.s32.totalorder %s15, 1
      %p159 = scmp.ne.s32.totalorder %s154, %s156
      %p160 = scmp.eq.s32.totalorder %s15, 0
      %p161 = por %p159, %p160
      %p162 = scmp.ne.s32.totalorder %s154, %s156
      %p163 = scmp.eq.s32.totalorder %s20, 1
      %p164 = por %p162, %p163
      %p165 = scmp.ne.s32.totalorder %s156, %s157
      %p166 = scmp.eq.s32.totalorder %s20, 0
      %p167 = por %p165, %p166
      %p168 = scmp.ne.s32.totalorder %s156, %s157
      %p169 = scmp.eq.s32.totalorder %s21, 1
      %p170 = por %p168, %p169
      %p172 = scmp.ne.s32.totalorder %s157, %s171
      %p173 = scmp.eq.s32.totalorder %s21, 0
      %p174 = por %p172, %p173
      %s175 = ssub.s32 %s15, %s22
      %p176 = scmp.eq.s32.totalorder %s175, 0
      %s178 = sadd.s32 %s177, 1
      %s179 = scalar_select %p176, %s177, %s178
      %p182 = pneg %p176
      %p183 = scmp.eq.s32.totalorder %s15, 1
      %p184 = por %p182, %p183
      %p185 = scmp.ne.s32.totalorder %s177, %s180
      %p186 = scmp.eq.s32.totalorder %s15, 0
      %p187 = por %p185, %p186
      %p188 = scmp.ne.s32.totalorder %s177, %s180
      %p189 = scmp.eq.s32.totalorder %s20, 1
      %p190 = por %p188, %p189
      %p191 = scmp.ne.s32.totalorder %s180, %s181
      %p192 = scmp.eq.s32.totalorder %s20, 0
      %p193 = por %p191, %p192
      %p194 = scmp.ne.s32.totalorder %s180, %s181
      %p195 = scmp.eq.s32.totalorder %s21, 1
      %p196 = por %p194, %p195
      %p198 = scmp.ne.s32.totalorder %s181, %s197
      %p199 = scmp.eq.s32.totalorder %s21, 0
      %p200 = por %p198, %p199
      %p201 = scmp.le.s32.totalorder 1, %s15
      %p202 = scmp.lt.s32.totalorder %s15, 3
      %p203 = pnand %p201, %p202
      %p204 = pneg %p203
      // Predicated region
      $region9: #{decoder_layer.3} parent=5 // pred_check
        _
      $region10: #{decoder_layer.3} parent=5 // pred_check_branch
        %206 = sbr.rel (%p203) target = $region12
      $region11: #{decoder_layer.3} parent=5 // pred_region
        %s207 = ssub.s32 %s15, 1
        // Predicated region
        $region13: #{decoder_layer.3} parent=11 // pred_check
          %p208 = pneg %p62
        $region14: #{decoder_layer.3} parent=11 // pred_check_branch
          %210 = sbr.rel (%p208) target = $region16
        $region15: #{decoder_layer.3} parent=11 // pred_region
          _
        $region16: #{decoder_layer.3} parent=11 // pred_fallthru
          _
        // Predicated region
        $region17: #{decoder_layer.3} parent=11 // pred_check
          %p211 = pneg %p83
        $region18: #{decoder_layer.3} parent=11 // pred_check_branch
          %213 = sbr.rel (%p211) target = $region20
        $region19: #{decoder_layer.3} parent=11 // pred_region
          _
        $region20: #{decoder_layer.3} parent=11 // pred_fallthru
          _
        // Predicated region
        $region21: #{decoder_layer.3} parent=11 // pred_check
          %p214 = pneg %p104
        $region22: #{decoder_layer.3} parent=11 // pred_check_branch
          %216 = sbr.rel (%p214) target = $region24
        $region23: #{decoder_layer.3} parent=11 // pred_region
          %218 = vsyncadd [#allocation3], 0
          %s219 = sshll.u32 %s3, 4
          %s220 = int_to_ptr.hbm [resolvable:$true] %s219
          %s221 = sshll.u32 [#allocation2], 4
          %s222 = int_to_ptr.vmem [resolvable:$true] %s221
          %227 = dma.hbm_to_vmem [thread:$0]  %s220, 512, %s222, [#allocation3], 128, 128, 8
        $region24: #{decoder_layer.3} parent=11 // pred_fallthru
          _
        // Predicated region
        $region25: #{decoder_layer.3} parent=11 // pred_check
          %p228 = pneg %p125
        $region26: #{decoder_layer.3} parent=11 // pred_check_branch
          %230 = sbr.rel (%p228) target = $region28
        $region27: #{decoder_layer.3} parent=11 // pred_region
          _
        $region28: #{decoder_layer.3} parent=11 // pred_fallthru
          _
        // Predicated region
        $region29: #{decoder_layer.3} parent=11 // pred_check
          %p231 = pneg %p146
        $region30: #{decoder_layer.3} parent=11 // pred_check_branch
          %233 = sbr.rel (%p231) target = $region32
        $region31: #{decoder_layer.3} parent=11 // pred_region
          %235 = vsyncadd [#allocation5], 0
          %s236 = sshll.u32 %s5, 4
          %s237 = int_to_ptr.hbm [resolvable:$true] %s236
          %s238 = sshll.u32 [#allocation4], 4
          %s239 = int_to_ptr.vmem [resolvable:$true] %s238
          %244 = dma.hbm_to_vmem [thread:$0]  %s237, 512, %s239, [#allocation5], 128, 128, 8
        $region32: #{decoder_layer.3} parent=11 // pred_fallthru
          _
        // Predicated region
        $region33: #{decoder_layer.3} parent=11 // pred_check
          %p245 = pneg %p167
        $region34: #{decoder_layer.3} parent=11 // pred_check_branch
          %247 = sbr.rel (%p245) target = $region36
        $region35: #{decoder_layer.3} parent=11 // pred_region
          _
        $region36: #{decoder_layer.3} parent=11 // pred_fallthru
          _
      $region12: #{decoder_layer.3} parent=5 // pred_fallthru
        _
      %p248 = scmp.lt.s32.totalorder %s15, 2
      // Predicated region
      $region37: #{decoder_layer.3} parent=5 // pred_check
        %p249 = pneg %p248
      $region38: #{decoder_layer.3} parent=5 // pred_check_branch
        %251 = sbr.rel (%p249) target = $region40
      $region39: #{decoder_layer.3} parent=5 // pred_region
        // Predicated region
        $region41: #{decoder_layer.3} parent=39 // pred_check
          %p252 = pneg %p35
        $region42: #{decoder_layer.3} parent=39 // pred_check_branch
          %254 = sbr.rel (%p252) target = $region44
        $region43: #{decoder_layer.3} parent=39 // pred_region
          %p255 = scmp.lt.s32.totalorder %s15, 1
          %s256 = scalar_select %p255, %s15, 1
          %s257 = smul.addr %s256, 8
          %s258 = scalar_lea.vmem %s0, %s257
        $region44: #{decoder_layer.3} parent=39 // pred_fallthru
          _
      $region40: #{decoder_layer.3} parent=5 // pred_fallthru
        _
      %p259 = scmp.le.s32.totalorder 1, %s15
      %p260 = scmp.lt.s32.totalorder %s15, 3
      %p261 = pnand %p259, %p260
      %p262 = pneg %p261
      // Predicated region
      $region45: #{decoder_layer.3} parent=5 // pred_check
        _
      $region46: #{decoder_layer.3} parent=5 // pred_check_branch
        %264 = sbr.rel (%p261) target = $region48
      $region47: #{decoder_layer.3} parent=5 // pred_region
        %s265 = ssub.s32 %s15, 1
        // Predicated region
        $region49: #{decoder_layer.3} parent=47 // pred_check
          %p266 = pneg %p104
        $region50: #{decoder_layer.3} parent=47 // pred_check_branch
          %268 = sbr.rel (%p266) target = $region52
        $region51: #{decoder_layer.3} parent=47 // pred_region
          %270 = dma.done [#allocation3], 512
        $region52: #{decoder_layer.3} parent=47 // pred_fallthru
          _
        // Predicated region
        $region53: #{decoder_layer.3} parent=47 // pred_check
          %p271 = pneg %p146
        $region54: #{decoder_layer.3} parent=47 // pred_check_branch
          %273 = sbr.rel (%p271) target = $region56
        $region55: #{decoder_layer.3} parent=47 // pred_region
          %275 = dma.done [#allocation5], 512
        $region56: #{decoder_layer.3} parent=47 // pred_fallthru
          _
        %p276 = scmp.lt.s32.totalorder %s20, 1
        %s277 = scalar_select %p276, %s20, 1
        %s278 = smul.addr %s277, 8
        %s279 = scalar_lea.vmem %s0, %s278
        %p280 = pneg %p41
        %p281 = pneg %p38
        %p282 = pneg %p62
        %p283 = pneg %p59
        %p284 = pneg %p83
        %p285 = pneg %p80
        %p286 = pneg %p104
        %p287 = pneg %p101
        %p288 = pneg %p125
        %p289 = pneg %p122
        %p290 = pneg %p146
        %p291 = pneg %p143
        %p292 = pneg %p167
        %p293 = pneg %p164
        %p294 = pneg %p193
        %p295 = pneg %p190
        %p296 = scmp.lt.s32.totalorder %s20, 1
        %s297 = scalar_select %p296, %s20, 1
        %s298 = smul.addr %s297, 8
        %s299 = scalar_lea.vmem %s7, %s298
        %p300 = scmp.lt.s32.totalorder %s20, 1
        %s301 = scalar_select %p300, %s20, 1
        %s302 = smul.addr %s301, 8
        %s303 = scalar_lea.vmem %s0, %s302
        %p304 = scmp.lt.s32.totalorder %s20, 1
        %s305 = scalar_select %p304, %s20, 1
        %s306 = smul.addr %s305, 8
        %s307 = scalar_lea.vmem %s7, %s306
        %v308 = vld [vmem:[%s303] sm:$0xff]
        %v309 = vld [vmem:[%s1] sm:$0x1]
        %v310 = vld [vmem:[%s2] sm:$0x1]
        %vm311 = vcmask 261120
        %v312 = vsel %vm311, %v308, 0.0
        %313 = vadd.xlane.f32.xlu0 %v312
        %v314 = vpop.xlane.xlu0 %313
        %v315 = vrcp.pop 32.0
        %v316 = vmul.f32 32.0, %v315
        %v317 = vsub.f32 1.0, %v316
        %v318 = vmul.f32 %v315, %v317
        %v319 = vadd.f32 %v315, %v318
        %vm320 = vweird.f32 %v315
        %v321 = vsel %vm320, %v315, %v319
        %v322 = vmul.f32 %v314, %v321
        %v323 = vsub.f32 %v308, %v322
        %v324 = vmul.f32 %v323, %v323
        %v325 = vsel %vm311, %v324, 0.0
        %326 = vadd.xlane.f32.xlu0 %v325
        %v327 = vpop.xlane.xlu0 %326
        %v328 = vmul.f32 %v327, 0.032258064
        %v329 = vrsqrt.pop %v328
        %v330 = vmul.f32 %v329, %v328
        %v331 = vmul.f32 %v330, %v329
        %v332 = vmul.f32 0.5, %v331
        %v333 = vsub.f32 1.5, %v332
        %v334 = vmul.f32 %v329, %v333
        %v335 = vmul.f32 %v328, %v334
        %vm336 = vcmp.eq.f32.partialorder %v328, inf
        %v337 = vsel %vm336, %v328, %v335
        %vm338 = vcmp.eq.f32.partialorder %v328, 0.0
        %v339 = vand.u32 %v328, 2147483648
        %v340 = vsel %vm338, %v339, %v337
        %v341 = vadd.f32 %v340, 1e-06
        %v342 = vrcp.pop %v341
        %v343 = vmul.f32 %v341, %v342
        %v344 = vsub.f32 1.0, %v343
        %v345 = vmul.f32 %v342, %v344
        %v346 = vadd.f32 %v342, %v345
        %vm347 = vweird.f32 %v341
        %vm348 = vweird.f32 %v342
        %vm349 = vmor %vm347, %vm348
        %v350 = vsel %vm349, %v342, %v346
        %v351 = vand.u32 2147483647, %v341
        %vm352 = vcmp.eq.f32.partialorder %v351, 8.507059e+37
        %v353 = vand.u32 %v341, 2147483648
        %v354 = vor.u32 1.1754944e-38, %v353
        %v355 = vsel %vm352, %v354, %v350
        %v356 = vmul.f32 %v323, %v355
        %v358 = vperm.slane %v309, 0
        %v360 = vmul.f32 %v358, %v356
        %v362 = vperm.slane %v310, 0
        %v364 = vadd.f32 %v360, %v362
        %v365 = vld [vmem:[#allocation2] sm:$0xff]
        %v366 = vld [vmem:[#allocation2 + $0x8] sm:$0xff]
        %v367 = vld [vmem:[#allocation2 + $0x10] sm:$0xff]
        %v368 = vld [vmem:[#allocation2 + $0x18] sm:$0xff]
        %v369 = vld [vmem:[%s4] sm:$0x1]
        %v371 = vperm.slane %v369, 0
        %v374 = vsel %vm311, %v364, 0
        %376 = vmatpush.msra.mxu0 0.0
        %377 = vmatpush.msra.mxu0 0.0
        %378 = vmatpush.msra.mxu0 0.0
        %379 = vmatpush.msra.mxu0 0.0
        %380 = vmatpush.msra.mxu0 0.0
        %381 = vmatpush.msra.mxu0 0.0
        %382 = vmatpush.msra.mxu0 0.0
        %383 = vmatpush.msra.mxu0 0.0
        %384 = vmatpush.msra.mxu0 0.0
        %385 = vmatpush.msra.mxu0 0.0
        %386 = vmatpush.msra.mxu0 0.0
        %387 = vmatpush.msra.mxu0 0.0
        %388 = vmatpush.msra.mxu0 %v368
        %389 = vmatpush.msra.mxu0 %v367
        %390 = vmatpush.msra.mxu0 %v366
        %391 = vmatpush.msra.mxu0 %v365
        %392 = vmatmul.f32.gmra.mxu0 %v374
        %v393 = vpop.f32.mrf.mxu0
        %v394 = vadd.f32 %v371, %v393
        %395 = vdwg.mxu0
        %v396 = vlaneseq
        %v397 = vshrl.u32 %v396, 7
        %v398 = vlaneseq
        %v399 = vand.u32 %v398, 127
        %vm400 = vcmp.gt.s32.totalorder %v399, %v397
        %v401 = vld [vmem:[#allocation4] sm:$0xff]
        %v402 = vld [vmem:[#allocation4 + $0x8] sm:$0xff]
        %v403 = vld [vmem:[#allocation4 + $0x10] sm:$0xff]
        %v404 = vld [vmem:[#allocation4 + $0x18] sm:$0xff]
        %v405 = vld [vmem:[%s6] sm:$0x1]
        %407 = vrot.lane.b32.xlu0 %v394, 96
        %v408 = vpop.permute.xlu0 %407
        %vm409 = vcmask 64512
        %v410 = vsel %vm409, %v394, 0
        %v412 = vsel %vm409, %v408, 0
        %414 = vmatpush.xpose.msra.mxu0 0.0
        %415 = vmatpush.xpose.msra.mxu0 0.0
        %416 = vmatpush.xpose.msra.mxu0 0.0
        %417 = vmatpush.xpose.msra.mxu0 0.0
        %418 = vmatpush.xpose.msra.mxu0 0.0
        %419 = vmatpush.xpose.msra.mxu0 0.0
        %420 = vmatpush.xpose.msra.mxu0 0.0
        %421 = vmatpush.xpose.msra.mxu0 0.0
        %422 = vmatpush.xpose.msra.mxu0 0.0
        %423 = vmatpush.xpose.msra.mxu0 0.0
        %424 = vmatpush.xpose.msra.mxu0 0.0
        %425 = vmatpush.xpose.msra.mxu0 0.0
        %426 = vmatpush.xpose.msra.mxu0 0.0
        %427 = vmatpush.xpose.msra.mxu0 0.0
        %428 = vmatpush.xpose.msra.mxu0 0.0
        %429 = vmatpush.xpose.msra.mxu0 %v412
        %430 = vmatmul.f32.gmra.mxu0 %v410
        %v431 = vpop.f32.mrf.mxu0
        %v432 = vadd.f32 0.0, %v431
        %433 = vdwg.mxu0
        %v434 = vmul.f32 %v432, 0.35355338
        %v435 = vsel %vm400, -1e+09, %v434
        %v436 = vsel %vm409, %v435, -inf
        %437 = vmax.xlane.f32.xlu0 %v436
        %v438 = vpop.xlane.xlu0 %437
        %v439 = vsub.f32 %v435, %v438
        %v440 = vmul.f32 %v439, 1.442695
        %v441 = vpow.pop %v440
        %v442 = vsel %vm409, %v441, 0.0
        %443 = vadd.xlane.f32.xlu0 %v442
        %v444 = vpop.xlane.xlu0 %443
        %v445 = vrcp.pop %v444
        %v446 = vmul.f32 %v444, %v445
        %v447 = vsub.f32 1.0, %v446
        %v448 = vmul.f32 %v445, %v447
        %v449 = vadd.f32 %v445, %v448
        %vm450 = vweird.f32 %v444
        %vm451 = vweird.f32 %v445
        %vm452 = vmor %vm450, %vm451
        %v453 = vsel %vm452, %v445, %v449
        %v454 = vand.u32 2147483647, %v444
        %vm455 = vcmp.eq.f32.partialorder %v454, 8.507059e+37
        %v456 = vand.u32 %v444, 2147483648
        %v457 = vor.u32 1.1754944e-38, %v456
        %v458 = vsel %vm455, %v457, %v453
        %v459 = vmul.f32 %v441, %v458
        %460 = vrot.lane.b32.xlu0 %v394, 64
        %v461 = vpop.permute.xlu0 %460
        %v464 = vsel %vm409, %v459, 0
        %466 = vmatpush.msra.mxu0 0.0
        %467 = vmatpush.msra.mxu0 0.0
        %468 = vmatpush.msra.mxu0 0.0
        %469 = vmatpush.msra.mxu0 0.0
        %470 = vmatpush.msra.mxu0 0.0
        %471 = vmatpush.msra.mxu0 0.0
        %472 = vmatpush.msra.mxu0 0.0
        %473 = vmatpush.msra.mxu0 0.0
        %474 = vmatpush.msra.mxu0 0.0
        %475 = vmatpush.msra.mxu0 0.0
        %476 = vmatpush.msra.mxu0 0.0
        %477 = vmatpush.msra.mxu0 0.0
        %478 = vmatpush.msra.mxu0 0.0
        %479 = vmatpush.msra.mxu0 0.0
        %480 = vmatpush.msra.mxu0 0.0
        %481 = vmatpush.msra.mxu0 %v461
        %482 = vmatmul.f32.gmra.mxu0 %v464
        %v483 = vpop.f32.mrf.mxu0
        %v484 = vadd.f32 0.0, %v483
        %485 = vdwg.mxu0
        %486 = vrot.lane.b32.xlu0 %v394, 120
        %v487 = vpop.permute.xlu0 %486
        %488 = vrot.lane.b32.xlu0 %v394, 88
        %v489 = vpop.permute.xlu0 %488
        %v490 = vsel %vm409, %v487, 0
        %v492 = vsel %vm409, %v489, 0
        %494 = vmatpush.xpose.msra.mxu0 0.0
        %495 = vmatpush.xpose.msra.mxu0 0.0
        %496 = vmatpush.xpose.msra.mxu0 0.0
        %497 = vmatpush.xpose.msra.mxu0 0.0
        %498 = vmatpush.xpose.msra.mxu0 0.0
        %499 = vmatpush.xpose.msra.mxu0 0.0
        %500 = vmatpush.xpose.msra.mxu0 0.0
        %501 = vmatpush.xpose.msra.mxu0 0.0
        %502 = vmatpush.xpose.msra.mxu0 0.0
        %503 = vmatpush.xpose.msra.mxu0 0.0
        %504 = vmatpush.xpose.msra.mxu0 0.0
        %505 = vmatpush.xpose.msra.mxu0 0.0
        %506 = vmatpush.xpose.msra.mxu0 0.0
        %507 = vmatpush.xpose.msra.mxu0 0.0
        %508 = vmatpush.xpose.msra.mxu0 0.0
        %509 = vmatpush.xpose.msra.mxu0 %v492
        %510 = vmatmul.f32.gmra.mxu0 %v490
        %v511 = vpop.f32.mrf.mxu0
        %v512 = vadd.f32 0.0, %v511
        %513 = vdwg.mxu0
        %v514 = vmul.f32 %v512, 0.35355338
        %v515 = vsel %vm400, -1e+09, %v514
        %v516 = vsel %vm409, %v515, -inf
        %517 = vmax.xlane.f32.xlu0 %v516
        %v518 = vpop.xlane.xlu0 %517
        %v519 = vsub.f32 %v515, %v518
        %v520 = vmul.f32 %v519, 1.442695
        %v521 = vpow.pop %v520
        %v522 = vsel %vm409, %v521, 0.0
        %523 = vadd.xlane.f32.xlu0 %v522
        %v524 = vpop.xlane.xlu0 %523
        %v525 = vrcp.pop %v524
        %v526 = vmul.f32 %v524, %v525
        %v527 = vsub.f32 1.0, %v526
        %v528 = vmul.f32 %v525, %v527
        %v529 = vadd.f32 %v525, %v528
        %vm530 = vweird.f32 %v524
        %vm531 = vweird.f32 %v525
        %vm532 = vmor %vm530, %vm531
        %v533 = vsel %vm532, %v525, %v529
        %v534 = vand.u32 2147483647, %v524
        %vm535 = vcmp.eq.f32.partialorder %v534, 8.507059e+37
        %v536 = vand.u32 %v524, 2147483648
        %v537 = vor.u32 1.1754944e-38, %v536
        %v538 = vsel %vm535, %v537, %v533
        %v539 = vmul.f32 %v521, %v538
        %540 = vrot.lane.b32.xlu0 %v394, 56
        %v541 = vpop.permute.xlu0 %540
        %v544 = vsel %vm409, %v539, 0
        %546 = vmatpush.msra.mxu0 0.0
        %547 = vmatpush.msra.mxu0 0.0
        %548 = vmatpush.msra.mxu0 0.0
        %549 = vmatpush.msra.mxu0 0.0
        %550 = vmatpush.msra.mxu0 0.0
        %551 = vmatpush.msra.mxu0 0.0
        %552 = vmatpush.msra.mxu0 0.0
        %553 = vmatpush.msra.mxu0 0.0
        %554 = vmatpush.msra.mxu0 0.0
        %555 = vmatpush.msra.mxu0 0.0
        %556 = vmatpush.msra.mxu0 0.0
        %557 = vmatpush.msra.mxu0 0.0
        %558 = vmatpush.msra.mxu0 0.0
        %559 = vmatpush.msra.mxu0 0.0
        %560 = vmatpush.msra.mxu0 0.0
        %561 = vmatpush.msra.mxu0 %v541
        %562 = vmatmul.f32.gmra.mxu0 %v544
        %v563 = vpop.f32.mrf.mxu0
        %v564 = vadd.f32 0.0, %v563
        %565 = vdwg.mxu0
        %566 = vrot.lane.b32.xlu0 %v394, 112
        %v567 = vpop.permute.xlu0 %566
        %568 = vrot.lane.b32.xlu0 %v394, 80
        %v569 = vpop.permute.xlu0 %568
        %v570 = vsel %vm409, %v567, 0
        %v572 = vsel %vm409, %v569, 0
        %574 = vmatpush.xpose.msra.mxu0 0.0
        %575 = vmatpush.xpose.msra.mxu0 0.0
        %576 = vmatpush.xpose.msra.mxu0 0.0
        %577 = vmatpush.xpose.msra.mxu0 0.0
        %578 = vmatpush.xpose.msra.mxu0 0.0
        %579 = vmatpush.xpose.msra.mxu0 0.0
        %580 = vmatpush.xpose.msra.mxu0 0.0
        %581 = vmatpush.xpose.msra.mxu0 0.0
        %582 = vmatpush.xpose.msra.mxu0 0.0
        %583 = vmatpush.xpose.msra.mxu0 0.0
        %584 = vmatpush.xpose.msra.mxu0 0.0
        %585 = vmatpush.xpose.msra.mxu0 0.0
        %586 = vmatpush.xpose.msra.mxu0 0.0
        %587 = vmatpush.xpose.msra.mxu0 0.0
        %588 = vmatpush.xpose.msra.mxu0 0.0
        %589 = vmatpush.xpose.msra.mxu0 %v572
        %590 = vmatmul.f32.gmra.mxu0 %v570
        %v591 = vpop.f32.mrf.mxu0
        %v592 = vadd.f32 0.0, %v591
        %593 = vdwg.mxu0
        %v594 = vmul.f32 %v592, 0.35355338
        %v595 = vsel %vm400, -1e+09, %v594
        %v596 = vsel %vm409, %v595, -inf
        %597 = vmax.xlane.f32.xlu0 %v596
        %v598 = vpop.xlane.xlu0 %597
        %v599 = vsub.f32 %v595, %v598
        %v600 = vmul.f32 %v599, 1.442695
        %v601 = vpow.pop %v600
        %v602 = vsel %vm409, %v601, 0.0
        %603 = vadd.xlane.f32.xlu0 %v602
        %v604 = vpop.xlane.xlu0 %603
        %v605 = vrcp.pop %v604
        %v606 = vmul.f32 %v604, %v605
        %v607 = vsub.f32 1.0, %v606
        %v608 = vmul.f32 %v605, %v607
        %v609 = vadd.f32 %v605, %v608
        %vm610 = vweird.f32 %v604
        %vm611 = vweird.f32 %v605
        %vm612 = vmor %vm610, %vm611
        %v613 = vsel %vm612, %v605, %v609
        %v614 = vand.u32 2147483647, %v604
        %vm615 = vcmp.eq.f32.partialorder %v614, 8.507059e+37
        %v616 = vand.u32 %v604, 2147483648
        %v617 = vor.u32 1.1754944e-38, %v616
        %v618 = vsel %vm615, %v617, %v613
        %v619 = vmul.f32 %v601, %v618
        %620 = vrot.lane.b32.xlu0 %v394, 48
        %v621 = vpop.permute.xlu0 %620
        %v624 = vsel %vm409, %v619, 0
        %626 = vmatpush.msra.mxu0 0.0
        %627 = vmatpush.msra.mxu0 0.0
        %628 = vmatpush.msra.mxu0 0.0
        %629 = vmatpush.msra.mxu0 0.0
        %630 = vmatpush.msra.mxu0 0.0
        %631 = vmatpush.msra.mxu0 0.0
        %632 = vmatpush.msra.mxu0 0.0
        %633 = vmatpush.msra.mxu0 0.0
        %634 = vmatpush.msra.mxu0 0.0
        %635 = vmatpush.msra.mxu0 0.0
        %636 = vmatpush.msra.mxu0 0.0
        %637 = vmatpush.msra.mxu0 0.0
        %638 = vmatpush.msra.mxu0 0.0
        %639 = vmatpush.msra.mxu0 0.0
        %640 = vmatpush.msra.mxu0 0.0
        %641 = vmatpush.msra.mxu0 %v621
        %642 = vmatmul.f32.gmra.mxu0 %v624
        %v643 = vpop.f32.mrf.mxu0
        %v644 = vadd.f32 0.0, %v643
        %645 = vdwg.mxu0
        %646 = vrot.lane.b32.xlu0 %v394, 104
        %v647 = vpop.permute.xlu0 %646
        %648 = vrot.lane.b32.xlu0 %v394, 72
        %v649 = vpop.permute.xlu0 %648
        %v650 = vsel %vm409, %v647, 0
        %v652 = vsel %vm409, %v649, 0
        %654 = vmatpush.xpose.msra.mxu0 0.0
        %655 = vmatpush.xpose.msra.mxu0 0.0
        %656 = vmatpush.xpose.msra.mxu0 0.0
        %657 = vmatpush.xpose.msra.mxu0 0.0
        %658 = vmatpush.xpose.msra.mxu0 0.0
        %659 = vmatpush.xpose.msra.mxu0 0.0
        %660 = vmatpush.xpose.msra.mxu0 0.0
        %661 = vmatpush.xpose.msra.mxu0 0.0
        %662 = vmatpush.xpose.msra.mxu0 0.0
        %663 = vmatpush.xpose.msra.mxu0 0.0
        %664 = vmatpush.xpose.msra.mxu0 0.0
        %665 = vmatpush.xpose.msra.mxu0 0.0
        %666 = vmatpush.xpose.msra.mxu0 0.0
        %667 = vmatpush.xpose.msra.mxu0 0.0
        %668 = vmatpush.xpose.msra.mxu0 0.0
        %669 = vmatpush.xpose.msra.mxu0 %v652
        %670 = vmatmul.f32.gmra.mxu0 %v650
        %v671 = vpop.f32.mrf.mxu0
        %v672 = vadd.f32 0.0, %v671
        %673 = vdwg.mxu0
        %v674 = vmul.f32 %v672, 0.35355338
        %v675 = vsel %vm400, -1e+09, %v674
        %v676 = vsel %vm409, %v675, -inf
        %677 = vmax.xlane.f32.xlu0 %v676
        %v678 = vpop.xlane.xlu0 %677
        %v679 = vsub.f32 %v675, %v678
        %v680 = vmul.f32 %v679, 1.442695
        %v681 = vpow.pop %v680
        %v682 = vsel %vm409, %v681, 0.0
        %683 = vadd.xlane.f32.xlu0 %v682
        %v684 = vpop.xlane.xlu0 %683
        %v685 = vrcp.pop %v684
        %v686 = vmul.f32 %v684, %v685
        %v687 = vsub.f32 1.0, %v686
        %v688 = vmul.f32 %v685, %v687
        %v689 = vadd.f32 %v685, %v688
        %vm690 = vweird.f32 %v684
        %vm691 = vweird.f32 %v685
        %vm692 = vmor %vm690, %vm691
        %v693 = vsel %vm692, %v685, %v689
        %v694 = vand.u32 2147483647, %v684
        %vm695 = vcmp.eq.f32.partialorder %v694, 8.507059e+37
        %v696 = vand.u32 %v684, 2147483648
        %v697 = vor.u32 1.1754944e-38, %v696
        %v698 = vsel %vm695, %v697, %v693
        %v699 = vmul.f32 %v681, %v698
        %700 = vrot.lane.b32.xlu0 %v394, 40
        %v701 = vpop.permute.xlu0 %700
        %v704 = vsel %vm409, %v699, 0
        %706 = vmatpush.msra.mxu0 0.0
        %707 = vmatpush.msra.mxu0 0.0
        %708 = vmatpush.msra.mxu0 0.0
        %709 = vmatpush.msra.mxu0 0.0
        %710 = vmatpush.msra.mxu0 0.0
        %711 = vmatpush.msra.mxu0 0.0
        %712 = vmatpush.msra.mxu0 0.0
        %713 = vmatpush.msra.mxu0 0.0
        %714 = vmatpush.msra.mxu0 0.0
        %715 = vmatpush.msra.mxu0 0.0
        %716 = vmatpush.msra.mxu0 0.0
        %717 = vmatpush.msra.mxu0 0.0
        %718 = vmatpush.msra.mxu0 0.0
        %719 = vmatpush.msra.mxu0 0.0
        %720 = vmatpush.msra.mxu0 0.0
        %721 = vmatpush.msra.mxu0 %v701
        %722 = vmatmul.f32.gmra.mxu0 %v704
        %v723 = vpop.f32.mrf.mxu0
        %v724 = vadd.f32 0.0, %v723
        %725 = vdwg.mxu0
        %727 = vrot.lane.b32.xlu0 %v564, 8
        %v728 = vpop.permute.xlu0 %727
        %731 = vrot.lane.b32.xlu0 %v644, 16
        %v732 = vpop.permute.xlu0 %731
        %735 = vrot.lane.b32.xlu0 %v724, 24
        %v736 = vpop.permute.xlu0 %735
        %v738 = vsel %vm409, %v484, %v728
        %vm739 = vcmask 130048
        %v740 = vsel %vm739, %v738, %v732
        %vm741 = vcmask 195584
        %v742 = vsel %vm741, %v740, %v736
        %v744 = vperm.slane %v405, 0
        %v747 = vsel %vm311, %v742, 0
        %749 = vmatpush.msra.mxu0 0.0
        %750 = vmatpush.msra.mxu0 0.0
        %751 = vmatpush.msra.mxu0 0.0
        %752 = vmatpush.msra.mxu0 0.0
        %753 = vmatpush.msra.mxu0 0.0
        %754 = vmatpush.msra.mxu0 0.0
        %755 = vmatpush.msra.mxu0 0.0
        %756 = vmatpush.msra.mxu0 0.0
        %757 = vmatpush.msra.mxu0 0.0
        %758 = vmatpush.msra.mxu0 0.0
        %759 = vmatpush.msra.mxu0 0.0
        %760 = vmatpush.msra.mxu0 0.0
        %761 = vmatpush.msra.mxu0 %v404
        %762 = vmatpush.msra.mxu0 %v403
        %763 = vmatpush.msra.mxu0 %v402
        %764 = vmatpush.msra.mxu0 %v401
        %765 = vmatmul.f32.gmra.mxu0 %v747
        %v766 = vpop.f32.mrf.mxu0
        %v767 = vadd.f32 %v744, %v766
        %768 = vdwg.mxu0
        %v769 = vadd.f32 %v308, %v767
        %770 = vst.msk [vmem:[%s307] sm:$0xff] %vm311, %v769
        %p771 = scmp.lt.s32.totalorder %s20, 1
        %s772 = scalar_select %p771, %s20, 1
        %s773 = smul.addr %s772, 8
        %s774 = scalar_lea.vmem %s7, %s773
        // Predicated region
        $region57: #{decoder_layer.3} parent=47 // pred_check
          %p775 = pneg %p190
        $region58: #{decoder_layer.3} parent=47 // pred_check_branch
          %777 = sbr.rel (%p775) target = $region60
        $region59: #{decoder_layer.3} parent=47 // pred_region
          _
        $region60: #{decoder_layer.3} parent=47 // pred_fallthru
          _
      $region48: #{decoder_layer.3} parent=5 // pred_fallthru
        _
      %p778 = scmp.le.s32.totalorder 2, %s15
      // Predicated region
      $region61: #{decoder_layer.3} parent=5 // pred_check
        %p779 = pneg %p778
      $region62: #{decoder_layer.3} parent=5 // pred_check_branch
        %781 = sbr.rel (%p779) target = $region64
      $region63: #{decoder_layer.3} parent=5 // pred_region
        %s782 = ssub.s32 %s15, 2
        // Predicated region
        $region65: #{decoder_layer.3} parent=63 // pred_check
          %p783 = pneg %p196
        $region66: #{decoder_layer.3} parent=63 // pred_check_branch
          %785 = sbr.rel (%p783) target = $region68
        $region67: #{decoder_layer.3} parent=63 // pred_region
          %p786 = scmp.lt.s32.totalorder %s21, 1
          %s787 = scalar_select %p786, %s21, 1
          %s788 = smul.addr %s787, 8
          %s789 = scalar_lea.vmem %s7, %s788
        $region68: #{decoder_layer.3} parent=63 // pred_fallthru
          _
      $region64: #{decoder_layer.3} parent=5 // pred_fallthru
        _
    $region6: #{decoder_layer.3} parent=1 // loop_footer
      %s19 = sadd.s32 1, %s15
    $region7: #{decoder_layer.3} parent=1 // loop_footer_branch
      %14 = sbr.rel target = $region3
    $region8: #{decoder_layer.3} parent=1 // loop_exit
      _
    %790 = vsyncpa [#allocation3], 1
    %s791 = scalar_lea.sflag [#allocation3], 1
    %792 = vsyncpa %s791, 1
    %793 = vsyncpa [#allocation5], 1

// kernel: decoder_layer.4
$region0: #{decoder_layer.4}
  #allocation0 [shape = 'u32[]', space=smem, size = 0x4, offset = 0x4, fixed_abs, tag = 'smem constant byte address 0x4 - core index']
  #allocation1 [shape = 'u32[72,128]{1,0:T(1,128)}', space=vmem, size = 0x9000, scoped, tag = 'internal scratch']
  %s0 = inlined_call_operand.vmem [shape: f32[2,8,32], index: 0, kind: input, shape index: {}]
  %s1 = inlined_call_operand.hbm [shape: f32[2,8,32], index: 1, kind: input, shape index: {}]
  %s2 = inlined_call_operand.vmem [shape: f32[1,32], index: 2, kind: input, shape index: {}]
  %s3 = inlined_call_operand.vmem [shape: f32[1,32], index: 3, kind: input, shape index: {}]
  %s4 = inlined_call_operand.hbm [shape: f32[32,32], index: 4, kind: input, shape index: {}]
  %s5 = inlined_call_operand.vmem [shape: f32[1,32], index: 5, kind: input, shape index: {}]
  %s6 = inlined_call_operand.hbm [shape: f32[32,64], index: 6, kind: input, shape index: {}]
  %s7 = inlined_call_operand.vmem [shape: f32[1,64], index: 7, kind: input, shape index: {}]
  %s8 = inlined_call_operand.hbm [shape: f32[32,32], index: 8, kind: input, shape index: {}]
  %s9 = inlined_call_operand.vmem [shape: f32[1,32], index: 9, kind: input, shape index: {}]
  %s10 = inlined_call_operand.vmem [shape: f32[2,8,32], index: 10, kind: output, shape index: {}]
  %s11 = sld [smem:[#allocation0]]
  $region89: #{decoder_layer.4} parent=0
    _
  %s13 = ssub.s32 1, %s11
  %s14 = scalar_select 0, %s13, %s11
  $region1: #{decoder_layer.4} parent=0
    #allocation2 [shape = 'u8[8192]{0}', space=vmem, size = 0x2000, scoped, tag = 'input window, operand 1']
    #allocation3 [shape = 's32[2]{0}', space=sflag, size = 0x8, scoped, tag = 'scoped memory for decoder_layer.4']
    #allocation4 [shape = 'u8[16384]{0}', space=vmem, size = 0x4000, scoped, tag = 'input window, operand 4, single buffered']
    #allocation5 [shape = 's32[1]{0}', space=sflag, size = 0x4, scoped, tag = 'scoped memory for decoder_layer.4']
    #allocation6 [shape = 'u8[16384]{0}', space=vmem, size = 0x4000, scoped, tag = 'input window, operand 6, single buffered']
    #allocation7 [shape = 'u8[16384]{0}', space=vmem, size = 0x4000, scoped, tag = 'input window, operand 8, single buffered']
    #allocation8 [shape = 's32[1]{0}', space=sflag, size = 0x4, scoped, tag = 'scoped memory for decoder_layer.4']
    %15 = vsyncpa [#allocation3], 0
    %s16 = scalar_lea.sflag [#allocation3], 1
    %17 = vsyncpa %s16, 0
    %18 = vsyncpa [#allocation5], 0
    %19 = vsyncpa [#allocation8], 0
    loop: start=0, step=1, limit=4
    $region2: #{decoder_layer.4} parent=1 // loop_pre_header
      _
    $region3: #{decoder_layer.4} parent=1 // loop_header
      %s21 = sphi 0, %s25
      %p22 = scmp.ge.s32.totalorder %s21, 4
      %s31 = sphi 0, %s33
      %s34 = sphi 0, %s31
      %s35 = sphi 0, %s34
      %s51 = sphi 0, %s35
      %s57 = sphi 0, %s59
      %s60 = sphi 0, %s57
      %s61 = sphi 0, %s60
      %s77 = sphi 0, %s61
      %s81 = sphi 0, %s81
      %s83 = sphi 0, %s81
      %s84 = sphi 0, %s83
      %s98 = sphi 0, %s84
      %s102 = sphi 0, %s102
      %s104 = sphi 0, %s102
      %s105 = sphi 0, %s104
      %s119 = sphi 0, %s105
      %s123 = sphi 0, %s123
      %s125 = sphi 0, %s123
      %s126 = sphi 0, %s125
      %s140 = sphi 0, %s126
      %s144 = sphi 0, %s144
      %s146 = sphi 0, %s144
      %s147 = sphi 0, %s146
      %s161 = sphi 0, %s147
      %s165 = sphi 0, %s165
      %s167 = sphi 0, %s165
      %s168 = sphi 0, %s167
      %s182 = sphi 0, %s168
      %s186 = sphi 0, %s186
      %s188 = sphi 0, %s186
      %s189 = sphi 0, %s188
      %s203 = sphi 0, %s189
      %s207 = sphi 0, %s207
      %s209 = sphi 0, %s207
      %s210 = sphi 0, %s209
      %s224 = sphi 0, %s210
      %s228 = sphi 0, %s228
      %s230 = sphi 0, %s228
      %s231 = sphi 0, %s230
      %s245 = sphi 0, %s231
      %s251 = sphi 0, %s253
      %s254 = sphi 0, %s251
      %s255 = sphi 0, %s254
      %s271 = sphi 0, %s255
    $region4: #{decoder_layer.4} parent=1 // loop_header_branch
      %24 = sbr.rel (%p22) target = $region8
    $region5: #{decoder_layer.4} parent=1 // loop_body
      %s26 = ssub.s32 %s21, 1
      %s27 = ssub.s32 %s21, 2
      %s28 = sadd.s32 %s21, 1
      %s29 = ssub.s32 %s21, %s28
      %p30 = scmp.eq.s32.totalorder %s29, 0
      %s32 = sadd.s32 %s31, 1
      %s33 = scalar_select %p30, %s31, %s32
      %p36 = pneg %p30
      %p37 = scmp.eq.s32.totalorder %s21, 1
      %p38 = por %p36, %p37
      %p39 = scmp.ne.s32.totalorder %s31, %s34
      %p40 = scmp.eq.s32.totalorder %s21, 0
      %p41 = por %p39, %p40
      %p42 = scmp.ne.s32.totalorder %s31, %s34
      %p43 = scmp.eq.s32.totalorder %s26, 1
      %p44 = por %p42, %p43
      %p45 = scmp.ne.s32.totalorder %s34, %s35
      %p46 = scmp.eq.s32.totalorder %s26, 0
      %p47 = por %p45, %p46
      %p48 = scmp.ne.s32.totalorder %s34, %s35
      %p49 = scmp.eq.s32.totalorder %s27, 1
      %p50 = por %p48, %p49
      %p52 = scmp.ne.s32.totalorder %s35, %s51
      %p53 = scmp.eq.s32.totalorder %s27, 0
      %p54 = por %p52, %p53
      %s55 = ssub.s32 %s21, %s28
      %p56 = scmp.eq.s32.totalorder %s55, 0
      %s58 = sadd.s32 %s57, 1
      %s59 = scalar_select %p56, %s57, %s58
      %p62 = pneg %p56
      %p63 = scmp.eq.s32.totalorder %s21, 1
      %p64 = por %p62, %p63
      %p65 = scmp.ne.s32.totalorder %s57, %s60
      %p66 = scmp.eq.s32.totalorder %s21, 0
      %p67 = por %p65, %p66
      %p68 = scmp.ne.s32.totalorder %s57, %s60
      %p69 = scmp.eq.s32.totalorder %s26, 1
      %p70 = por %p68, %p69
      %p71 = scmp.ne.s32.totalorder %s60, %s61
      %p72 = scmp.eq.s32.totalorder %s26, 0
      %p73 = por %p71, %p72
      %p74 = scmp.ne.s32.totalorder %s60, %s61
      %p75 = scmp.eq.s32.totalorder %s27, 1
      %p76 = por %p74, %p75
      %p78 = scmp.ne.s32.totalorder %s61, %s77
      %p79 = scmp.eq.s32.totalorder %s27, 0
      %p80 = por %p78, %p79
      %s82 = sadd.s32 %s81, 1
      %p85 = scmp.eq.s32.totalorder %s21, 1
      %p86 = scmp.ne.s32.totalorder %s81, %s83
      %p87 = scmp.eq.s32.totalorder %s21, 0
      %p88 = por %p86, %p87
      %p89 = scmp.ne.s32.totalorder %s81, %s83
      %p90 = scmp.eq.s32.totalorder %s26, 1
      %p91 = por %p89, %p90
      %p92 = scmp.ne.s32.totalorder %s83, %s84
      %p93 = scmp.eq.s32.totalorder %s26, 0
      %p94 = por %p92, %p93
      %p95 = scmp.ne.s32.totalorder %s83, %s84
      %p96 = scmp.eq.s32.totalorder %s27, 1
      %p97 = por %p95, %p96
      %p99 = scmp.ne.s32.totalorder %s84, %s98
      %p100 = scmp.eq.s32.totalorder %s27, 0
      %p101 = por %p99, %p100
      %s103 = sadd.s32 %s102, 1
      %p106 = scmp.eq.s32.totalorder %s21, 1
      %p107 = scmp.ne.s32.totalorder %s102, %s104
      %p108 = scmp.eq.s32.totalorder %s21, 0
      %p109 = por %p107, %p108
      %p110 = scmp.ne.s32.totalorder %s102, %s104
      %p111 = scmp.eq.s32.totalorder %s26, 1
      %p112 = por %p110, %p111
      %p113 = scmp.ne.s32.totalorder %s104, %s105
      %p114 = scmp.eq.s32.totalorder %s26, 0
      %p115 = por %p113, %p114
      %p116 = scmp.ne.s32.totalorder %s104, %s105
      %p117 = scmp.eq.s32.totalorder %s27, 1
      %p118 = por %p116, %p117
      %p120 = scmp.ne.s32.totalorder %s105, %s119
      %p121 = scmp.eq.s32.totalorder %s27, 0
      %p122 = por %p120, %p121
      %s124 = sadd.s32 %s123, 1
      %p127 = scmp.eq.s32.totalorder %s21, 1
      %p128 = scmp.ne.s32.totalorder %s123, %s125
      %p129 = scmp.eq.s32.totalorder %s21, 0
      %p130 = por %p128, %p129
      %p131 = scmp.ne.s32.totalorder %s123, %s125
      %p132 = scmp.eq.s32.totalorder %s26, 1
      %p133 = por %p131, %p132
      %p134 = scmp.ne.s32.totalorder %s125, %s126
      %p135 = scmp.eq.s32.totalorder %s26, 0
      %p136 = por %p134, %p135
      %p137 = scmp.ne.s32.totalorder %s125, %s126
      %p138 = scmp.eq.s32.totalorder %s27, 1
      %p139 = por %p137, %p138
      %p141 = scmp.ne.s32.totalorder %s126, %s140
      %p142 = scmp.eq.s32.totalorder %s27, 0
      %p143 = por %p141, %p142
      %s145 = sadd.s32 %s144, 1
      %p148 = scmp.eq.s32.totalorder %s21, 1
      %p149 = scmp.ne.s32.totalorder %s144, %s146
      %p150 = scmp.eq.s32.totalorder %s21, 0
      %p151 = por %p149, %p150
      %p152 = scmp.ne.s32.totalorder %s144, %s146
      %p153 = scmp.eq.s32.totalorder %s26, 1
      %p154 = por %p152, %p153
      %p155 = scmp.ne.s32.totalorder %s146, %s147
      %p156 = scmp.eq.s32.totalorder %s26, 0
      %p157 = por %p155, %p156
      %p158 = scmp.ne.s32.totalorder %s146, %s147
      %p159 = scmp.eq.s32.totalorder %s27, 1
      %p160 = por %p158, %p159
      %p162 = scmp.ne.s32.totalorder %s147, %s161
      %p163 = scmp.eq.s32.totalorder %s27, 0
      %p164 = por %p162, %p163
      %s166 = sadd.s32 %s165, 1
      %p169 = scmp.eq.s32.totalorder %s21, 1
      %p170 = scmp.ne.s32.totalorder %s165, %s167
      %p171 = scmp.eq.s32.totalorder %s21, 0
      %p172 = por %p170, %p171
      %p173 = scmp.ne.s32.totalorder %s165, %s167
      %p174 = scmp.eq.s32.totalorder %s26, 1
      %p175 = por %p173, %p174
      %p176 = scmp.ne.s32.totalorder %s167, %s168
      %p177 = scmp.eq.s32.totalorder %s26, 0
      %p178 = por %p176, %p177
      %p179 = scmp.ne.s32.totalorder %s167, %s168
      %p180 = scmp.eq.s32.totalorder %s27, 1
      %p181 = por %p179, %p180
      %p183 = scmp.ne.s32.totalorder %s168, %s182
      %p184 = scmp.eq.s32.totalorder %s27, 0
      %p185 = por %p183, %p184
      %s187 = sadd.s32 %s186, 1
      %p190 = scmp.eq.s32.totalorder %s21, 1
      %p191 = scmp.ne.s32.totalorder %s186, %s188
      %p192 = scmp.eq.s32.totalorder %s21, 0
      %p193 = por %p191, %p192
      %p194 = scmp.ne.s32.totalorder %s186, %s188
      %p195 = scmp.eq.s32.totalorder %s26, 1
      %p196 = por %p194, %p195
      %p197 = scmp.ne.s32.totalorder %s188, %s189
      %p198 = scmp.eq.s32.totalorder %s26, 0
      %p199 = por %p197, %p198
      %p200 = scmp.ne.s32.totalorder %s188, %s189
      %p201 = scmp.eq.s32.totalorder %s27, 1
      %p202 = por %p200, %p201
      %p204 = scmp.ne.s32.totalorder %s189, %s203
      %p205 = scmp.eq.s32.totalorder %s27, 0
      %p206 = por %p204, %p205
      %s208 = sadd.s32 %s207, 1
      %p211 = scmp.eq.s32.totalorder %s21, 1
      %p212 = scmp.ne.s32.totalorder %s207, %s209
      %p213 = scmp.eq.s32.totalorder %s21, 0
      %p214 = por %p212, %p213
      %p215 = scmp.ne.s32.totalorder %s207, %s209
      %p216 = scmp.eq.s32.totalorder %s26, 1
      %p217 = por %p215, %p216
      %p218 = scmp.ne.s32.totalorder %s209, %s210
      %p219 = scmp.eq.s32.totalorder %s26, 0
      %p220 = por %p218, %p219
      %p221 = scmp.ne.s32.totalorder %s209, %s210
      %p222 = scmp.eq.s32.totalorder %s27, 1
      %p223 = por %p221, %p222
      %p225 = scmp.ne.s32.totalorder %s210, %s224
      %p226 = scmp.eq.s32.totalorder %s27, 0
      %p227 = por %p225, %p226
      %s229 = sadd.s32 %s228, 1
      %p232 = scmp.eq.s32.totalorder %s21, 1
      %p233 = scmp.ne.s32.totalorder %s228, %s230
      %p234 = scmp.eq.s32.totalorder %s21, 0
      %p235 = por %p233, %p234
      %p236 = scmp.ne.s32.totalorder %s228, %s230
      %p237 = scmp.eq.s32.totalorder %s26, 1
      %p238 = por %p236, %p237
      %p239 = scmp.ne.s32.totalorder %s230, %s231
      %p240 = scmp.eq.s32.totalorder %s26, 0
      %p241 = por %p239, %p240
      %p242 = scmp.ne.s32.totalorder %s230, %s231
      %p243 = scmp.eq.s32.totalorder %s27, 1
      %p244 = por %p242, %p243
      %p246 = scmp.ne.s32.totalorder %s231, %s245
      %p247 = scmp.eq.s32.totalorder %s27, 0
      %p248 = por %p246, %p247
      %s249 = ssub.s32 %s21, %s28
      %p250 = scmp.eq.s32.totalorder %s249, 0
      %s252 = sadd.s32 %s251, 1
      %s253 = scalar_select %p250, %s251, %s252
      %p256 = pneg %p250
      %p257 = scmp.eq.s32.totalorder %s21, 1
      %p258 = por %p256, %p257
      %p259 = scmp.ne.s32.totalorder %s251, %s254
      %p260 = scmp.eq.s32.totalorder %s21, 0
      %p261 = por %p259, %p260
      %p262 = scmp.ne.s32.totalorder %s251, %s254
      %p263 = scmp.eq.s32.totalorder %s26, 1
      %p264 = por %p262, %p263
      %p265 = scmp.ne.s32.totalorder %s254, %s255
      %p266 = scmp.eq.s32.totalorder %s26, 0
      %p267 = por %p265, %p266
      %p268 = scmp.ne.s32.totalorder %s254, %s255
      %p269 = scmp.eq.s32.totalorder %s27, 1
      %p270 = por %p268, %p269
      %p272 = scmp.ne.s32.totalorder %s255, %s271
      %p273 = scmp.eq.s32.totalorder %s27, 0
      %p274 = por %p272, %p273
      %p275 = scmp.le.s32.totalorder 1, %s21
      %p276 = scmp.lt.s32.totalorder %s21, 3
      %p277 = pnand %p275, %p276
      %p278 = pneg %p277
      // Predicated region
      $region9: #{decoder_layer.4} parent=5 // pred_check
        _
      $region10: #{decoder_layer.4} parent=5 // pred_check_branch
        %280 = sbr.rel (%p277) target = $region12
      $region11: #{decoder_layer.4} parent=5 // pred_region
        %s281 = ssub.s32 %s21, 1
        // Predicated region
        $region13: #{decoder_layer.4} parent=11 // pred_check
          %p282 = pneg %p94
        $region14: #{decoder_layer.4} parent=11 // pred_check_branch
          %284 = sbr.rel (%p282) target = $region16
        $region15: #{decoder_layer.4} parent=11 // pred_region
          _
        $region16: #{decoder_layer.4} parent=11 // pred_fallthru
          _
        // Predicated region
        $region17: #{decoder_layer.4} parent=11 // pred_check
          %p285 = pneg %p115
        $region18: #{decoder_layer.4} parent=11 // pred_check_branch
          %287 = sbr.rel (%p285) target = $region20
        $region19: #{decoder_layer.4} parent=11 // pred_region
          _
        $region20: #{decoder_layer.4} parent=11 // pred_fallthru
          _
        // Predicated region
        $region21: #{decoder_layer.4} parent=11 // pred_check
          %p288 = pneg %p136
        $region22: #{decoder_layer.4} parent=11 // pred_check_branch
          %290 = sbr.rel (%p288) target = $region24
        $region23: #{decoder_layer.4} parent=11 // pred_region
          %292 = vsyncadd [#allocation5], 0
          %s293 = sshll.u32 %s4, 4
          %s294 = int_to_ptr.hbm [resolvable:$true] %s293
          %s295 = sshll.u32 [#allocation4], 4
          %s296 = int_to_ptr.vmem [resolvable:$true] %s295
          %301 = dma.hbm_to_vmem [thread:$0]  %s294, 512, %s296, [#allocation5], 128, 128, 8
        $region24: #{decoder_layer.4} parent=11 // pred_fallthru
          _
        // Predicated region
        $region25: #{decoder_layer.4} parent=11 // pred_check
          %p302 = pneg %p157
        $region26: #{decoder_layer.4} parent=11 // pred_check_branch
          %304 = sbr.rel (%p302) target = $region28
        $region27: #{decoder_layer.4} parent=11 // pred_region
          _
        $region28: #{decoder_layer.4} parent=11 // pred_fallthru
          _
        // Predicated region
        $region29: #{decoder_layer.4} parent=11 // pred_check
          %p305 = pneg %p178
        $region30: #{decoder_layer.4} parent=11 // pred_check_branch
          %307 = sbr.rel (%p305) target = $region32
        $region31: #{decoder_layer.4} parent=11 // pred_region
          %309 = vsyncadd [#allocation5], 0
          %s310 = sshll.u32 %s6, 4
          %s311 = int_to_ptr.hbm [resolvable:$true] %s310
          %s312 = sshll.u32 [#allocation6], 4
          %s313 = int_to_ptr.vmem [resolvable:$true] %s312
          %318 = dma.hbm_to_vmem [thread:$0]  %s311, 512, %s313, [#allocation5], 128, 128, 8
        $region32: #{decoder_layer.4} parent=11 // pred_fallthru
          _
        // Predicated region
        $region33: #{decoder_layer.4} parent=11 // pred_check
          %p319 = pneg %p199
        $region34: #{decoder_layer.4} parent=11 // pred_check_branch
          %321 = sbr.rel (%p319) target = $region36
        $region35: #{decoder_layer.4} parent=11 // pred_region
          _
        $region36: #{decoder_layer.4} parent=11 // pred_fallthru
          _
        // Predicated region
        $region37: #{decoder_layer.4} parent=11 // pred_check
          %p322 = pneg %p220
        $region38: #{decoder_layer.4} parent=11 // pred_check_branch
          %324 = sbr.rel (%p322) target = $region40
        $region39: #{decoder_layer.4} parent=11 // pred_region
          %326 = vsyncadd [#allocation8], 0
          %s327 = sshll.u32 %s8, 4
          %s328 = int_to_ptr.hbm [resolvable:$true] %s327
          %s329 = sshll.u32 [#allocation7], 4
          %s330 = int_to_ptr.vmem [resolvable:$true] %s329
          %335 = dma.hbm_to_vmem [thread:$0]  %s328, 512, %s330, [#allocation8], 128, 128, 8
        $region40: #{decoder_layer.4} parent=11 // pred_fallthru
          _
        // Predicated region
        $region41: #{decoder_layer.4} parent=11 // pred_check
          %p336 = pneg %p241
        $region42: #{decoder_layer.4} parent=11 // pred_check_branch
          %338 = sbr.rel (%p336) target = $region44
        $region43: #{decoder_layer.4} parent=11 // pred_region
          _
        $region44: #{decoder_layer.4} parent=11 // pred_fallthru
          _
      $region12: #{decoder_layer.4} parent=5 // pred_fallthru
        _
      %p339 = scmp.lt.s32.totalorder %s21, 2
      // Predicated region
      $region45: #{decoder_layer.4} parent=5 // pred_check
        %p340 = pneg %p339
      $region46: #{decoder_layer.4} parent=5 // pred_check_branch
        %342 = sbr.rel (%p340) target = $region48
      $region47: #{decoder_layer.4} parent=5 // pred_region
        // Predicated region
        $region49: #{decoder_layer.4} parent=47 // pred_check
          %p343 = pneg %p41
        $region50: #{decoder_layer.4} parent=47 // pred_check_branch
          %345 = sbr.rel (%p343) target = $region52
        $region51: #{decoder_layer.4} parent=47 // pred_region
          %p346 = scmp.lt.s32.totalorder %s21, 1
          %s347 = scalar_select %p346, %s21, 1
          %s348 = smul.addr %s347, 8
          %s349 = scalar_lea.vmem %s0, %s348
        $region52: #{decoder_layer.4} parent=47 // pred_fallthru
          _
        // Predicated region
        $region53: #{decoder_layer.4} parent=47 // pred_check
          %p350 = pneg %p67
        $region54: #{decoder_layer.4} parent=47 // pred_check_branch
          %352 = sbr.rel (%p350) target = $region56
        $region55: #{decoder_layer.4} parent=47 // pred_region
          %s353 = sand.u32 %s57, 1
          %s354 = scalar_lea.sflag [#allocation3], %s353
          %s355 = sand.u32 %s57, 1
          %s356 = smul.addr %s355, 8
          %s357 = scalar_lea.vmem [#allocation2], %s356
          %359 = vsyncadd %s354, 0
          %s360 = smul.addr %s21, 8
          %s361 = scalar_lea.hbm %s1, %s360
          %s363 = sshll.u32 %s361, 4
          %s364 = int_to_ptr.hbm [resolvable:$true] %s363
          %s365 = sshll.u32 %s357, 4
          %s366 = int_to_ptr.vmem [resolvable:$true] %s365
          %368 = dma.hbm_to_vmem [thread:$0]  %s364, 128, %s366, %s354
        $region56: #{decoder_layer.4} parent=47 // pred_fallthru
          _
      $region48: #{decoder_layer.4} parent=5 // pred_fallthru
        _
      %p369 = scmp.le.s32.totalorder 1, %s21
      %p370 = scmp.lt.s32.totalorder %s21, 3
      %p371 = pnand %p369, %p370
      %p372 = pneg %p371
      // Predicated region
      $region57: #{decoder_layer.4} parent=5 // pred_check
        _
      $region58: #{decoder_layer.4} parent=5 // pred_check_branch
        %374 = sbr.rel (%p371) target = $region60
      $region59: #{decoder_layer.4} parent=5 // pred_region
        %s375 = ssub.s32 %s21, 1
        %s376 = sand.u32 %s60, 1
        %s377 = scalar_lea.sflag [#allocation3], %s376
        %s378 = sand.u32 %s60, 1
        %s379 = smul.addr %s378, 8
        %s380 = scalar_lea.vmem [#allocation2], %s379
        // Predicated region
        $region61: #{decoder_layer.4} parent=59 // pred_check
          %p381 = pneg %p73
        $region62: #{decoder_layer.4} parent=59 // pred_check_branch
          %383 = sbr.rel (%p381) target = $region64
        $region63: #{decoder_layer.4} parent=59 // pred_region
          %385 = dma.done %s377, 128
        $region64: #{decoder_layer.4} parent=59 // pred_fallthru
          _
        // Predicated region
        $region65: #{decoder_layer.4} parent=59 // pred_check
          %p386 = pneg %p136
        $region66: #{decoder_layer.4} parent=59 // pred_check_branch
          %388 = sbr.rel (%p386) target = $region68
        $region67: #{decoder_layer.4} parent=59 // pred_region
          %390 = dma.done [#allocation5], 512
        $region68: #{decoder_layer.4} parent=59 // pred_fallthru
          _
        // Predicated region
        $region69: #{decoder_layer.4} parent=59 // pred_check
          %p391 = pneg %p178
        $region70: #{decoder_layer.4} parent=59 // pred_check_branch
          %393 = sbr.rel (%p391) target = $region72
        $region71: #{decoder_layer.4} parent=59 // pred_region
          %395 = dma.done [#allocation5], 512
        $region72: #{decoder_layer.4} parent=59 // pred_fallthru
          _
        // Predicated region
        $region73: #{decoder_layer.4} parent=59 // pred_check
          %p396 = pneg %p220
        $region74: #{decoder_layer.4} parent=59 // pred_check_branch
          %398 = sbr.rel (%p396) target = $region76
        $region75: #{decoder_layer.4} parent=59 // pred_region
          %400 = dma.done [#allocation8], 512
        $region76: #{decoder_layer.4} parent=59 // pred_fallthru
          _
        %p401 = scmp.lt.s32.totalorder %s26, 1
        %s402 = scalar_select %p401, %s26, 1
        %s403 = smul.addr %s402, 8
        %s404 = scalar_lea.vmem %s0, %s403
        %p405 = pneg %p47
        %p406 = pneg %p44
        %s407 = sand.u32 %s60, 1
        %s408 = scalar_lea.sflag [#allocation3], %s407
        %s409 = sand.u32 %s60, 1
        %s410 = smul.addr %s409, 8
        %s411 = scalar_lea.vmem [#allocation2], %s410
        %p412 = pneg %p73
        %p413 = pneg %p70
        %p414 = pneg %p94
        %p415 = pneg %p91
        %p416 = pneg %p115
        %p417 = pneg %p112
        %p418 = pneg %p136
        %p419 = pneg %p133
        %p420 = pneg %p157
        %p421 = pneg %p154
        %p422 = pneg %p178
        %p423 = pneg %p175
        %p424 = pneg %p199
        %p425 = pneg %p196
        %p426 = pneg %p220
        %p427 = pneg %p217
        %p428 = pneg %p241
        %p429 = pneg %p238
        %p430 = pneg %p267
        %p431 = pneg %p264
        %p432 = scmp.lt.s32.totalorder %s26, 1
        %s433 = scalar_select %p432, %s26, 1
        %s434 = smul.addr %s433, 8
        %s435 = scalar_lea.vmem %s10, %s434
        %p436 = scmp.lt.s32.totalorder %s26, 1
        %s437 = scalar_select %p436, %s26, 1
        %s438 = smul.addr %s437, 8
        %s439 = scalar_lea.vmem %s0, %s438
        %p440 = scmp.lt.s32.totalorder %s26, 1
        %s441 = scalar_select %p440, %s26, 1
        %s442 = smul.addr %s441, 8
        %s443 = scalar_lea.vmem %s10, %s442
        %v444 = vld [vmem:[%s439] sm:$0xff]
        %v445 = vld [vmem:[%s2] sm:$0x1]
        %v446 = vld [vmem:[%s3] sm:$0x1]
        %vm447 = vcmask 261120
        %v448 = vsel %vm447, %v444, 0.0
        %449 = vadd.xlane.f32.xlu0 %v448
        %v450 = vpop.xlane.xlu0 %449
        %v451 = vrcp.pop 32.0
        %v452 = vmul.f32 32.0, %v451
        %v453 = vsub.f32 1.0, %v452
        %v454 = vmul.f32 %v451, %v453
        %v455 = vadd.f32 %v451, %v454
        %vm456 = vweird.f32 %v451
        %v457 = vsel %vm456, %v451, %v455
        %v458 = vmul.f32 %v450, %v457
        %v459 = vsub.f32 %v444, %v458
        %v460 = vmul.f32 %v459, %v459
        %v461 = vsel %vm447, %v460, 0.0
        %462 = vadd.xlane.f32.xlu0 %v461
        %v463 = vpop.xlane.xlu0 %462
        %v464 = vmul.f32 %v463, 0.032258064
        %v465 = vrsqrt.pop %v464
        %v466 = vmul.f32 %v465, %v464
        %v467 = vmul.f32 %v466, %v465
        %v468 = vmul.f32 0.5, %v467
        %v469 = vsub.f32 1.5, %v468
        %v470 = vmul.f32 %v465, %v469
        %v471 = vmul.f32 %v464, %v470
        %vm472 = vcmp.eq.f32.partialorder %v464, inf
        %v473 = vsel %vm472, %v464, %v471
        %vm474 = vcmp.eq.f32.partialorder %v464, 0.0
        %v475 = vand.u32 %v464, 2147483648
        %v476 = vsel %vm474, %v475, %v473
        %v477 = vadd.f32 %v476, 1e-06
        %v478 = vrcp.pop %v477
        %v479 = vmul.f32 %v477, %v478
        %v480 = vsub.f32 1.0, %v479
        %v481 = vmul.f32 %v478, %v480
        %v482 = vadd.f32 %v478, %v481
        %vm483 = vweird.f32 %v477
        %vm484 = vweird.f32 %v478
        %vm485 = vmor %vm483, %vm484
        %v486 = vsel %vm485, %v478, %v482
        %v487 = vand.u32 2147483647, %v477
        %vm488 = vcmp.eq.f32.partialorder %v487, 8.507059e+37
        %v489 = vand.u32 %v477, 2147483648
        %v490 = vor.u32 1.1754944e-38, %v489
        %v491 = vsel %vm488, %v490, %v486
        %v492 = vmul.f32 %v459, %v491
        %v494 = vperm.slane %v445, 0
        %v496 = vmul.f32 %v494, %v492
        %v498 = vperm.slane %v446, 0
        %v500 = vadd.f32 %v496, %v498
        %v501 = vld [vmem:[#allocation4] sm:$0xff]
        %v502 = vld [vmem:[#allocation4 + $0x8] sm:$0xff]
        %v503 = vld [vmem:[#allocation4 + $0x10] sm:$0xff]
        %v504 = vld [vmem:[#allocation4 + $0x18] sm:$0xff]
        %v505 = vld [vmem:[%s5] sm:$0x1]
        %v507 = vperm.slane %v505, 0
        %v510 = vsel %vm447, %v500, 0
        %512 = vmatpush.msra.mxu0 0.0
        %513 = vmatpush.msra.mxu0 0.0
        %514 = vmatpush.msra.mxu0 0.0
        %515 = vmatpush.msra.mxu0 0.0
        %516 = vmatpush.msra.mxu0 0.0
        %517 = vmatpush.msra.mxu0 0.0
        %518 = vmatpush.msra.mxu0 0.0
        %519 = vmatpush.msra.mxu0 0.0
        %520 = vmatpush.msra.mxu0 0.0
        %521 = vmatpush.msra.mxu0 0.0
        %522 = vmatpush.msra.mxu0 0.0
        %523 = vmatpush.msra.mxu0 0.0
        %524 = vmatpush.msra.mxu0 %v504
        %525 = vmatpush.msra.mxu0 %v503
        %526 = vmatpush.msra.mxu0 %v502
        %527 = vmatpush.msra.mxu0 %v501
        %528 = vmatmul.f32.gmra.mxu0 %v510
        %v529 = vpop.f32.mrf.mxu0
        %v530 = vadd.f32 %v507, %v529
        %531 = vdwg.mxu0
        %v532 = vld [vmem:[%s380] sm:$0xff]
        %v533 = vld [vmem:[#allocation6] sm:$0xff]
        %v534 = vld [vmem:[#allocation6 + $0x8] sm:$0xff]
        %v535 = vld [vmem:[#allocation6 + $0x10] sm:$0xff]
        %v536 = vld [vmem:[#allocation6 + $0x18] sm:$0xff]
        %v537 = vld [vmem:[%s7] sm:$0x1]
        %v539 = vperm.slane %v537, 0
        %v542 = vsel %vm447, %v532, 0
        %544 = vmatpush.msra.mxu0 0.0
        %545 = vmatpush.msra.mxu0 0.0
        %546 = vmatpush.msra.mxu0 0.0
        %547 = vmatpush.msra.mxu0 0.0
        %548 = vmatpush.msra.mxu0 0.0
        %549 = vmatpush.msra.mxu0 0.0
        %550 = vmatpush.msra.mxu0 0.0
        %551 = vmatpush.msra.mxu0 0.0
        %552 = vmatpush.msra.mxu0 0.0
        %553 = vmatpush.msra.mxu0 0.0
        %554 = vmatpush.msra.mxu0 0.0
        %555 = vmatpush.msra.mxu0 0.0
        %556 = vmatpush.msra.mxu0 %v536
        %557 = vmatpush.msra.mxu0 %v535
        %558 = vmatpush.msra.mxu0 %v534
        %559 = vmatpush.msra.mxu0 %v533
        %560 = vmatmul.f32.gmra.mxu0 %v542
        %v561 = vpop.f32.mrf.mxu0
        %v562 = vadd.f32 %v539, %v561
        %563 = vdwg.mxu0
        %v564 = vld [vmem:[#allocation7] sm:$0xff]
        %v565 = vld [vmem:[#allocation7 + $0x8] sm:$0xff]
        %v566 = vld [vmem:[#allocation7 + $0x10] sm:$0xff]
        %v567 = vld [vmem:[#allocation7 + $0x18] sm:$0xff]
        %v568 = vld [vmem:[%s9] sm:$0x1]
        %vm569 = vcmask 64512
        %v571 = vsel %vm569, %v530, 0
        %v574 = vsel %vm569, %v562, 0
        %576 = vmatpush.xpose.msra.mxu0 0.0
        %577 = vmatpush.xpose.msra.mxu0 0.0
        %578 = vmatpush.xpose.msra.mxu0 0.0
        %579 = vmatpush.xpose.msra.mxu0 0.0
        %580 = vmatpush.xpose.msra.mxu0 0.0
        %581 = vmatpush.xpose.msra.mxu0 0.0
        %582 = vmatpush.xpose.msra.mxu0 0.0
        %583 = vmatpush.xpose.msra.mxu0 0.0
        %584 = vmatpush.xpose.msra.mxu0 0.0
        %585 = vmatpush.xpose.msra.mxu0 0.0
        %586 = vmatpush.xpose.msra.mxu0 0.0
        %587 = vmatpush.xpose.msra.mxu0 0.0
        %588 = vmatpush.xpose.msra.mxu0 0.0
        %589 = vmatpush.xpose.msra.mxu0 0.0
        %590 = vmatpush.xpose.msra.mxu0 0.0
        %591 = vmatpush.xpose.msra.mxu0 %v574
        %592 = vmatmul.f32.gmra.mxu0 %v571
        %v593 = vpop.f32.mrf.mxu0
        %v594 = vadd.f32 0.0, %v593
        %595 = vdwg.mxu0
        %v596 = vmul.f32 %v594, 0.35355338
        %v597 = vsel %vm569, %v596, -inf
        %598 = vmax.xlane.f32.xlu0 %v597
        %v599 = vpop.xlane.xlu0 %598
        %v600 = vsub.f32 %v596, %v599
        %v601 = vmul.f32 %v600, 1.442695
        %v602 = vpow.pop %v601
        %v603 = vsel %vm569, %v602, 0.0
        %604 = vadd.xlane.f32.xlu0 %v603
        %v605 = vpop.xlane.xlu0 %604
        %v606 = vrcp.pop %v605
        %v607 = vmul.f32 %v605, %v606
        %v608 = vsub.f32 1.0, %v607
        %v609 = vmul.f32 %v606, %v608
        %v610 = vadd.f32 %v606, %v609
        %vm611 = vweird.f32 %v605
        %vm612 = vweird.f32 %v606
        %vm613 = vmor %vm611, %vm612
        %v614 = vsel %vm613, %v606, %v610
        %v615 = vand.u32 2147483647, %v605
        %vm616 = vcmp.eq.f32.partialorder %v615, 8.507059e+37
        %v617 = vand.u32 %v605, 2147483648
        %v618 = vor.u32 1.1754944e-38, %v617
        %v619 = vsel %vm616, %v618, %v614
        %v620 = vmul.f32 %v602, %v619
        %621 = vrot.lane.b32.xlu0 %v562, 96
        %v622 = vpop.permute.xlu0 %621
        %v625 = vsel %vm569, %v620, 0
        %627 = vmatpush.msra.mxu0 0.0
        %628 = vmatpush.msra.mxu0 0.0
        %629 = vmatpush.msra.mxu0 0.0
        %630 = vmatpush.msra.mxu0 0.0
        %631 = vmatpush.msra.mxu0 0.0
        %632 = vmatpush.msra.mxu0 0.0
        %633 = vmatpush.msra.mxu0 0.0
        %634 = vmatpush.msra.mxu0 0.0
        %635 = vmatpush.msra.mxu0 0.0
        %636 = vmatpush.msra.mxu0 0.0
        %637 = vmatpush.msra.mxu0 0.0
        %638 = vmatpush.msra.mxu0 0.0
        %639 = vmatpush.msra.mxu0 0.0
        %640 = vmatpush.msra.mxu0 0.0
        %641 = vmatpush.msra.mxu0 0.0
        %642 = vmatpush.msra.mxu0 %v622
        %643 = vmatmul.f32.gmra.mxu0 %v625
        %v644 = vpop.f32.mrf.mxu0
        %v645 = vadd.f32 0.0, %v644
        %646 = vdwg.mxu0
        %647 = vrot.lane.b32.xlu0 %v530, 120
        %v648 = vpop.permute.xlu0 %647
        %649 = vrot.lane.b32.xlu0 %v562, 120
        %v650 = vpop.permute.xlu0 %649
        %v651 = vsel %vm569, %v648, 0
        %v653 = vsel %vm569, %v650, 0
        %655 = vmatpush.xpose.msra.mxu0 0.0
        %656 = vmatpush.xpose.msra.mxu0 0.0
        %657 = vmatpush.xpose.msra.mxu0 0.0
        %658 = vmatpush.xpose.msra.mxu0 0.0
        %659 = vmatpush.xpose.msra.mxu0 0.0
        %660 = vmatpush.xpose.msra.mxu0 0.0
        %661 = vmatpush.xpose.msra.mxu0 0.0
        %662 = vmatpush.xpose.msra.mxu0 0.0
        %663 = vmatpush.xpose.msra.mxu0 0.0
        %664 = vmatpush.xpose.msra.mxu0 0.0
        %665 = vmatpush.xpose.msra.mxu0 0.0
        %666 = vmatpush.xpose.msra.mxu0 0.0
        %667 = vmatpush.xpose.msra.mxu0 0.0
        %668 = vmatpush.xpose.msra.mxu0 0.0
        %669 = vmatpush.xpose.msra.mxu0 0.0
        %670 = vmatpush.xpose.msra.mxu0 %v653
        %671 = vmatmul.f32.gmra.mxu0 %v651
        %v672 = vpop.f32.mrf.mxu0
        %v673 = vadd.f32 0.0, %v672
        %674 = vdwg.mxu0
        %v675 = vmul.f32 %v673, 0.35355338
        %v676 = vsel %vm569, %v675, -inf
        %677 = vmax.xlane.f32.xlu0 %v676
        %v678 = vpop.xlane.xlu0 %677
        %v679 = vsub.f32 %v675, %v678
        %v680 = vmul.f32 %v679, 1.442695
        %v681 = vpow.pop %v680
        %v682 = vsel %vm569, %v681, 0.0
        %683 = vadd.xlane.f32.xlu0 %v682
        %v684 = vpop.xlane.xlu0 %683
        %v685 = vrcp.pop %v684
        %v686 = vmul.f32 %v684, %v685
        %v687 = vsub.f32 1.0, %v686
        %v688 = vmul.f32 %v685, %v687
        %v689 = vadd.f32 %v685, %v688
        %vm690 = vweird.f32 %v684
        %vm691 = vweird.f32 %v685
        %vm692 = vmor %vm690, %vm691
        %v693 = vsel %vm692, %v685, %v689
        %v694 = vand.u32 2147483647, %v684
        %vm695 = vcmp.eq.f32.partialorder %v694, 8.507059e+37
        %v696 = vand.u32 %v684, 2147483648
        %v697 = vor.u32 1.1754944e-38, %v696
        %v698 = vsel %vm695, %v697, %v693
        %v699 = vmul.f32 %v681, %v698
        %700 = vrot.lane.b32.xlu0 %v562, 88
        %v701 = vpop.permute.xlu0 %700
        %v704 = vsel %vm569, %v699, 0
        %706 = vmatpush.msra.mxu0 0.0
        %707 = vmatpush.msra.mxu0 0.0
        %708 = vmatpush.msra.mxu0 0.0
        %709 = vmatpush.msra.mxu0 0.0
        %710 = vmatpush.msra.mxu0 0.0
        %711 = vmatpush.msra.mxu0 0.0
        %712 = vmatpush.msra.mxu0 0.0
        %713 = vmatpush.msra.mxu0 0.0
        %714 = vmatpush.msra.mxu0 0.0
        %715 = vmatpush.msra.mxu0 0.0
        %716 = vmatpush.msra.mxu0 0.0
        %717 = vmatpush.msra.mxu0 0.0
        %718 = vmatpush.msra.mxu0 0.0
        %719 = vmatpush.msra.mxu0 0.0
        %720 = vmatpush.msra.mxu0 0.0
        %721 = vmatpush.msra.mxu0 %v701
        %722 = vmatmul.f32.gmra.mxu0 %v704
        %v723 = vpop.f32.mrf.mxu0
        %v724 = vadd.f32 0.0, %v723
        %725 = vdwg.mxu0
        %726 = vrot.lane.b32.xlu0 %v530, 112
        %v727 = vpop.permute.xlu0 %726
        %728 = vrot.lane.b32.xlu0 %v562, 112
        %v729 = vpop.permute.xlu0 %728
        %v730 = vsel %vm569, %v727, 0
        %v732 = vsel %vm569, %v729, 0
        %734 = vmatpush.xpose.msra.mxu0 0.0
        %735 = vmatpush.xpose.msra.mxu0 0.0
        %736 = vmatpush.xpose.msra.mxu0 0.0
        %737 = vmatpush.xpose.msra.mxu0 0.0
        %738 = vmatpush.xpose.msra.mxu0 0.0
        %739 = vmatpush.xpose.msra.mxu0 0.0
        %740 = vmatpush.xpose.msra.mxu0 0.0
        %741 = vmatpush.xpose.msra.mxu0 0.0
        %742 = vmatpush.xpose.msra.mxu0 0.0
        %743 = vmatpush.xpose.msra.mxu0 0.0
        %744 = vmatpush.xpose.msra.mxu0 0.0
        %745 = vmatpush.xpose.msra.mxu0 0.0
        %746 = vmatpush.xpose.msra.mxu0 0.0
        %747 = vmatpush.xpose.msra.mxu0 0.0
        %748 = vmatpush.xpose.msra.mxu0 0.0
        %749 = vmatpush.xpose.msra.mxu0 %v732
        %750 = vmatmul.f32.gmra.mxu0 %v730
        %v751 = vpop.f32.mrf.mxu0
        %v752 = vadd.f32 0.0, %v751
        %753 = vdwg.mxu0
        %v754 = vmul.f32 %v752, 0.35355338
        %v755 = vsel %vm569, %v754, -inf
        %756 = vmax.xlane.f32.xlu0 %v755
        %v757 = vpop.xlane.xlu0 %756
        %v758 = vsub.f32 %v754, %v757
        %v759 = vmul.f32 %v758, 1.442695
        %v760 = vpow.pop %v759
        %v761 = vsel %vm569, %v760, 0.0
        %762 = vadd.xlane.f32.xlu0 %v761
        %v763 = vpop.xlane.xlu0 %762
        %v764 = vrcp.pop %v763
        %v765 = vmul.f32 %v763, %v764
        %v766 = vsub.f32 1.0, %v765
        %v767 = vmul.f32 %v764, %v766
        %v768 = vadd.f32 %v764, %v767
        %vm769 = vweird.f32 %v763
        %vm770 = vweird.f32 %v764
        %vm771 = vmor %vm769, %vm770
        %v772 = vsel %vm771, %v764, %v768
        %v773 = vand.u32 2147483647, %v763
        %vm774 = vcmp.eq.f32.partialorder %v773, 8.507059e+37
        %v775 = vand.u32 %v763, 2147483648
        %v776 = vor.u32 1.1754944e-38, %v775
        %v777 = vsel %vm774, %v776, %v772
        %v778 = vmul.f32 %v760, %v777
        %779 = vrot.lane.b32.xlu0 %v562, 80
        %v780 = vpop.permute.xlu0 %779
        %v783 = vsel %vm569, %v778, 0
        %785 = vmatpush.msra.mxu0 0.0
        %786 = vmatpush.msra.mxu0 0.0
        %787 = vmatpush.msra.mxu0 0.0
        %788 = vmatpush.msra.mxu0 0.0
        %789 = vmatpush.msra.mxu0 0.0
        %790 = vmatpush.msra.mxu0 0.0
        %791 = vmatpush.msra.mxu0 0.0
        %792 = vmatpush.msra.mxu0 0.0
        %793 = vmatpush.msra.mxu0 0.0
        %794 = vmatpush.msra.mxu0 0.0
        %795 = vmatpush.msra.mxu0 0.0
        %796 = vmatpush.msra.mxu0 0.0
        %797 = vmatpush.msra.mxu0 0.0
        %798 = vmatpush.msra.mxu0 0.0
        %799 = vmatpush.msra.mxu0 0.0
        %800 = vmatpush.msra.mxu0 %v780
        %801 = vmatmul.f32.gmra.mxu0 %v783
        %v802 = vpop.f32.mrf.mxu0
        %v803 = vadd.f32 0.0, %v802
        %804 = vdwg.mxu0
        %805 = vrot.lane.b32.xlu0 %v530, 104
        %v806 = vpop.permute.xlu0 %805
        %807 = vrot.lane.b32.xlu0 %v562, 104
        %v808 = vpop.permute.xlu0 %807
        %v809 = vsel %vm569, %v806, 0
        %v811 = vsel %vm569, %v808, 0
        %813 = vmatpush.xpose.msra.mxu0 0.0
        %814 = vmatpush.xpose.msra.mxu0 0.0
        %815 = vmatpush.xpose.msra.mxu0 0.0
        %816 = vmatpush.xpose.msra.mxu0 0.0
        %817 = vmatpush.xpose.msra.mxu0 0.0
        %818 = vmatpush.xpose.msra.mxu0 0.0
        %819 = vmatpush.xpose.msra.mxu0 0.0
        %820 = vmatpush.xpose.msra.mxu0 0.0
        %821 = vmatpush.xpose.msra.mxu0 0.0
        %822 = vmatpush.xpose.msra.mxu0 0.0
        %823 = vmatpush.xpose.msra.mxu0 0.0
        %824 = vmatpush.xpose.msra.mxu0 0.0
        %825 = vmatpush.xpose.msra.mxu0 0.0
        %826 = vmatpush.xpose.msra.mxu0 0.0
        %827 = vmatpush.xpose.msra.mxu0 0.0
        %828 = vmatpush.xpose.msra.mxu0 %v811
        %829 = vmatmul.f32.gmra.mxu0 %v809
        %v830 = vpop.f32.mrf.mxu0
        %v831 = vadd.f32 0.0, %v830
        %832 = vdwg.mxu0
        %v833 = vmul.f32 %v831, 0.35355338
        %v834 = vsel %vm569, %v833, -inf
        %835 = vmax.xlane.f32.xlu0 %v834
        %v836 = vpop.xlane.xlu0 %835
        %v837 = vsub.f32 %v833, %v836
        %v838 = vmul.f32 %v837, 1.442695
        %v839 = vpow.pop %v838
        %v840 = vsel %vm569, %v839, 0.0
        %841 = vadd.xlane.f32.xlu0 %v840
        %v842 = vpop.xlane.xlu0 %841
        %v843 = vrcp.pop %v842
        %v844 = vmul.f32 %v842, %v843
        %v845 = vsub.f32 1.0, %v844
        %v846 = vmul.f32 %v843, %v845
        %v847 = vadd.f32 %v843, %v846
        %vm848 = vweird.f32 %v842
        %vm849 = vweird.f32 %v843
        %vm850 = vmor %vm848, %vm849
        %v851 = vsel %vm850, %v843, %v847
        %v852 = vand.u32 2147483647, %v842
        %vm853 = vcmp.eq.f32.partialorder %v852, 8.507059e+37
        %v854 = vand.u32 %v842, 2147483648
        %v855 = vor.u32 1.1754944e-38, %v854
        %v856 = vsel %vm853, %v855, %v851
        %v857 = vmul.f32 %v839, %v856
        %858 = vrot.lane.b32.xlu0 %v562, 72
        %v859 = vpop.permute.xlu0 %858
        %v862 = vsel %vm569, %v857, 0
        %864 = vmatpush.msra.mxu0 0.0
        %865 = vmatpush.msra.mxu0 0.0
        %866 = vmatpush.msra.mxu0 0.0
        %867 = vmatpush.msra.mxu0 0.0
        %868 = vmatpush.msra.mxu0 0.0
        %869 = vmatpush.msra.mxu0 0.0
        %870 = vmatpush.msra.mxu0 0.0
        %871 = vmatpush.msra.mxu0 0.0
        %872 = vmatpush.msra.mxu0 0.0
        %873 = vmatpush.msra.mxu0 0.0
        %874 = vmatpush.msra.mxu0 0.0
        %875 = vmatpush.msra.mxu0 0.0
        %876 = vmatpush.msra.mxu0 0.0
        %877 = vmatpush.msra.mxu0 0.0
        %878 = vmatpush.msra.mxu0 0.0
        %879 = vmatpush.msra.mxu0 %v859
        %880 = vmatmul.f32.gmra.mxu0 %v862
        %v881 = vpop.f32.mrf.mxu0
        %v882 = vadd.f32 0.0, %v881
        %883 = vdwg.mxu0
        %885 = vrot.lane.b32.xlu0 %v724, 8
        %v886 = vpop.permute.xlu0 %885
        %889 = vrot.lane.b32.xlu0 %v803, 16
        %v890 = vpop.permute.xlu0 %889
        %893 = vrot.lane.b32.xlu0 %v882, 24
        %v894 = vpop.permute.xlu0 %893
        %v896 = vsel %vm569, %v645, %v886
        %vm897 = vcmask 130048
        %v898 = vsel %vm897, %v896, %v890
        %vm899 = vcmask 195584
        %v900 = vsel %vm899, %v898, %v894
        %v902 = vperm.slane %v568, 0
        %v905 = vsel %vm447, %v900, 0
        %907 = vmatpush.msra.mxu0 0.0
        %908 = vmatpush.msra.mxu0 0.0
        %909 = vmatpush.msra.mxu0 0.0
        %910 = vmatpush.msra.mxu0 0.0
        %911 = vmatpush.msra.mxu0 0.0
        %912 = vmatpush.msra.mxu0 0.0
        %913 = vmatpush.msra.mxu0 0.0
        %914 = vmatpush.msra.mxu0 0.0
        %915 = vmatpush.msra.mxu0 0.0
        %916 = vmatpush.msra.mxu0 0.0
        %917 = vmatpush.msra.mxu0 0.0
        %918 = vmatpush.msra.mxu0 0.0
        %919 = vmatpush.msra.mxu0 %v567
        %920 = vmatpush.msra.mxu0 %v566
        %921 = vmatpush.msra.mxu0 %v565
        %922 = vmatpush.msra.mxu0 %v564
        %923 = vmatmul.f32.gmra.mxu0 %v905
        %v924 = vpop.f32.mrf.mxu0
        %v925 = vadd.f32 %v902, %v924
        %926 = vdwg.mxu0
        %v927 = vadd.f32 %v444, %v925
        %928 = vst.msk [vmem:[%s443] sm:$0xff] %vm447, %v927
        %p929 = scmp.lt.s32.totalorder %s26, 1
        %s930 = scalar_select %p929, %s26, 1
        %s931 = smul.addr %s930, 8
        %s932 = scalar_lea.vmem %s10, %s931
        // Predicated region
        $region77: #{decoder_layer.4} parent=59 // pred_check
          %p933 = pneg %p264
        $region78: #{decoder_layer.4} parent=59 // pred_check_branch
          %935 = sbr.rel (%p933) target = $region80
        $region79: #{decoder_layer.4} parent=59 // pred_region
          _
        $region80: #{decoder_layer.4} parent=59 // pred_fallthru
          _
      $region60: #{decoder_layer.4} parent=5 // pred_fallthru
        _
      %p936 = scmp.le.s32.totalorder 2, %s21
      // Predicated region
      $region81: #{decoder_layer.4} parent=5 // pred_check
        %p937 = pneg %p936
      $region82: #{decoder_layer.4} parent=5 // pred_check_branch
        %939 = sbr.rel (%p937) target = $region84
      $region83: #{decoder_layer.4} parent=5 // pred_region
        %s940 = ssub.s32 %s21, 2
        // Predicated region
        $region85: #{decoder_layer.4} parent=83 // pred_check
          %p941 = pneg %p270
        $region86: #{decoder_layer.4} parent=83 // pred_check_branch
          %943 = sbr.rel (%p941) target = $region88
        $region87: #{decoder_layer.4} parent=83 // pred_region
          %p944 = scmp.lt.s32.totalorder %s27, 1
          %s945 = scalar_select %p944, %s27, 1
          %s946 = smul.addr %s945, 8
          %s947 = scalar_lea.vmem %s10, %s946
        $region88: #{decoder_layer.4} parent=83 // pred_fallthru
          _
      $region84: #{decoder_layer.4} parent=5 // pred_fallthru
        _
    $region6: #{decoder_layer.4} parent=1 // loop_footer
      %s25 = sadd.s32 1, %s21
    $region7: #{decoder_layer.4} parent=1 // loop_footer_branch
      %20 = sbr.rel target = $region3
    $region8: #{decoder_layer.4} parent=1 // loop_exit
      _
    %948 = vsyncpa [#allocation3], 1
    %s949 = scalar_lea.sflag [#allocation3], 1
    %950 = vsyncpa %s949, 1
    %951 = vsyncpa [#allocation5], 1
    %952 = vsyncpa [#allocation8], 1

</llo_original>
